<compile_context>
chip_gen: v7x
topology: tpu7x:2x2x1
jax: 0.10.0
libtpu: 0.0.40
codegen_flags: <defaults>
</compile_context>

<pallas_src>
import functools

import jax
import jax.numpy as jnp
from jax import lax
from jax.experimental import pallas as pl
from jax.experimental.pallas import tpu as pltpu


def _ols_kernel(x_ref, tgt_col_ref, tgt_row_ref, mat_ref,
                loss_ref, grad_ref, count_ref, *, n_total):
    core = pl.program_id(0)
    j = pl.program_id(1)          # batch-tile index within this core's range

    # --- init the per-core resident accumulators (output blocks) ------------
    @pl.when(j == 0)
    def _init():
        loss_ref[...] = jnp.zeros_like(loss_ref)
        grad_ref[...] = jnp.zeros_like(grad_ref)
        count_ref[...] = jnp.zeros_like(count_ref)

    x_raw = x_ref[...]            # (TN, C) f32 logits (unpadded in HBM)
    tgt_col = tgt_col_ref[...]    # (TN, 1) int32
    tgt_row = tgt_row_ref[...]    # (1, TN) int32
    mat = mat_ref[...]            # (C, C)  f32 (resident)
    tn, c = x_raw.shape

    # Row-validity mask: handles the partial last batch tile (and any fully
    # out-of-range duplicate tiles) without padding x in HBM.
    tile_idx = core * pl.num_programs(1) + j
    row_ids = tile_idx * tn + lax.broadcasted_iota(jnp.int32, (tn, 1), 0)
    row_valid = row_ids < n_total                          # (TN, 1) bool
    x = jnp.where(row_valid, x_raw, 0.0)                   # sanitize tail rows

    # one-hot of the targets, built from an iota (no gather needed)
    classes = lax.broadcasted_iota(jnp.int32, (tn, c), 1)
    onehot = (classes == tgt_col).astype(jnp.float32)      # (TN, C)

    # log-softmax pieces with a single exp pass; softmax reuses exp(shifted)
    m = jnp.max(x, axis=-1, keepdims=True)                 # (TN, 1)
    shifted = x - m
    e = jnp.exp(shifted)                                   # one EUP pass
    sumexp = jnp.sum(e, axis=-1, keepdims=True)            # (TN, 1)
    logz = jnp.log(sumexp)
    p = e * pl.reciprocal(sumexp, approx=False)            # softmax, no 2nd exp

    # softlabel = matrix[target]  ==  onehot @ matrix  (MXU)
    softlabel = jnp.dot(onehot, mat, preferred_element_type=jnp.float32)
    # -softlabel * logprobs == softlabel * (logz - shifted); accumulate
    # lane-dense per class (sublane reduce only), final reduce in wrapper.
    loss_tile = jnp.where(row_valid, softlabel * (logz - shifted), 0.0)
    loss_ref[...] += jnp.sum(loss_tile, axis=0, keepdims=True)     # (1, C)

    # first-max argmax on the raw logits (exp is monotone) -> keeps torch's
    # tie-breaking semantics.
    idx = jnp.where(x >= m, classes, jnp.int32(c))
    pred = jnp.min(idx, axis=-1, keepdims=True)            # (TN, 1)
    correct = jnp.logical_and(pred == tgt_col, row_valid).astype(jnp.float32)
    pc = p * correct                                       # (TN, C)

    # transposed one-hot constructed directly -> MXU-oriented (C,TN)@(TN,C)
    classes_t = lax.broadcasted_iota(jnp.int32, (c, tn), 0)
    onehot_t = (classes_t == tgt_row).astype(jnp.float32)  # (C, TN)

    # TODO(synk): torch's `grad[correct_label] += correct_p` overwrites on
    # duplicate labels within a batch; we keep the (intended) accumulate
    # semantics here.
    grad_ref[...] += jnp.dot(onehot_t, pc, preferred_element_type=jnp.float32)
    # count on the VPU as a lane-dense (1, C) row, not a width-1 MXU matmul
    count_ref[...] += jnp.sum(onehot * correct, axis=0, keepdims=True)


def _round_up(v, m):
    return ((v + m - 1) // m) * m


@functools.partial(jax.jit, static_argnames=("tile_n", "n_cores"))
def online_label_smoothing_forward(x, target, matrix, *, tile_n=512, n_cores=1):
    """Returns (loss_mean, grad_increment, count_increment).

    n_cores=1 is correct for v5e/v6e (single TensorCore per chip); pass
    n_cores=2 on v7x to shard the leading "parallel" grid axis across cores.
    """
    n, c = x.shape
    x = x.astype(jnp.float32)
    matrix = matrix.astype(jnp.float32)
    tgt = target.reshape(-1).astype(jnp.int32)
    tgt_col = tgt.reshape(n, 1)
    tgt_row = tgt.reshape(1, n)

    # Effective batch tile.  A full-extent block is always legal when the
    # batch fits in one tile; otherwise tile_n must be a multiple of 128 so
    # the (1, tile_n) target-row block satisfies the lane constraint.
    if n <= tile_n:
        tn = n
    else:
        assert tile_n % 128 == 0, "tile_n must be a multiple of 128 when n > tile_n"
        tn = tile_n

    tiles = pl.cdiv(n, tn)
    n_cores = max(1, min(n_cores, tiles))
    tiles_per_core = pl.cdiv(tiles, n_cores)

    def batch_block(core, j):
        # Clamp so out-of-range duplicate tiles (only when tiles is not
        # divisible by n_cores) re-read the last block; their rows are fully
        # masked in-kernel and contribute zero.
        return (jnp.minimum(core * tiles_per_core + j, tiles - 1), 0)

    def batch_block_row(core, j):
        return (0, jnp.minimum(core * tiles_per_core + j, tiles - 1))

    # VMEM budget from the actual (lane/sublane padded) block shapes, clamped
    # to 56 MiB so it is safe on v7x's 64 MiB per-TensorCore VMEM.
    c_lane = _round_up(c, 128)
    c_sub = _round_up(c, 8)
    tn_sub = _round_up(tn, 8)
    vmem_est = 4 * (
        2 * tn_sub * c_lane            # x tiles (double-buffered)
        + 2 * tn_sub * 128             # target column tiles
        + 2 * 8 * _round_up(tn, 128)   # target row tiles
        + 2 * c_sub * c_lane           # resident matrix (double-buffered)
        + 2 * c_sub * c_lane           # grad accumulator block
        + 4 * 8 * c_lane               # loss + count accumulator blocks
        + 16 * tn_sub * c_lane         # elementwise intermediates / spill room
    )
    vmem_limit = int(min(56 * 1024 * 1024, max(32 * 1024 * 1024, vmem_est)))

    loss_p, grad_p, count_p = pl.pallas_call(
        functools.partial(_ols_kernel, n_total=n),
        out_shape=(
            jax.ShapeDtypeStruct((n_cores, 1, c), jnp.float32),   # per-class loss
            jax.ShapeDtypeStruct((n_cores, c, c), jnp.float32),   # partial grad
            jax.ShapeDtypeStruct((n_cores, 1, c), jnp.float32),   # partial count
        ),
        grid=(n_cores, tiles_per_core),
        in_specs=[
            pl.BlockSpec((tn, c), batch_block),        # x (unpadded in HBM)
            pl.BlockSpec((tn, 1), batch_block),        # target column
            pl.BlockSpec((1, tn), batch_block_row),    # target row
            # TODO(synk): on v7x with very large C, single-buffer this
            # resident block (pipeline_mode=pl.Buffered(1)) and/or add a
            # class-tile grid axis to keep (C, C) residency under 64 MiB.
            pl.BlockSpec((c, c), lambda core, j: (0, 0)),
        ],
        out_specs=(
            pl.BlockSpec((None, 1, c), lambda core, j: (core, 0, 0)),
            pl.BlockSpec((None, c, c), lambda core, j: (core, 0, 0)),
            pl.BlockSpec((None, 1, c), lambda core, j: (core, 0, 0)),
        ),
        compiler_params=pltpu.CompilerParams(
            dimension_semantics=("parallel", "arbitrary"),
            vmem_limit_bytes=vmem_limit,
        ),
    )(x, tgt_col, tgt_row, matrix)

    # TODO(synk): in production, alias the persistent grad/count running
    # buffers via input_output_aliases and accumulate in-kernel to skip this
    # extra HBM round trip.
    loss = jnp.sum(loss_p) / n
    grad_upd = jnp.sum(grad_p, axis=0)
    count_upd = jnp.sum(count_p, axis=(0, 1)).reshape(c, 1)
    return loss, grad_upd, count_upd


def _reference(x, target, matrix):
    logprobs = jax.nn.log_softmax(x, axis=-1)
    softlabel = matrix[target]
    loss = (-softlabel * logprobs).sum(axis=-1).mean()
    p = jax.nn.softmax(x, axis=1)
    pred = jnp.argmax(p, axis=1)
    correct = (pred == target).astype(jnp.float32)[:, None]
    onehot = jax.nn.one_hot(target, matrix.shape[0], dtype=jnp.float32)
    grad_upd = onehot.T @ (p * correct)
    count_upd = onehot.T @ correct
    return loss, grad_upd, count_upd


if __name__ == "__main__":
    # batch=200 (non-multiple of 128, exercises the row-validity mask),
    # num_classes=10 (module default).
    N, C = 200, 10
    key = jax.random.PRNGKey(0)
    kx, kt, km = jax.random.split(key, 3)

    x = jax.random.normal(kx, (N, C), dtype=jnp.float32)
    target = jax.random.randint(kt, (N,), 0, C, dtype=jnp.int32)
    # Deterministic row-stochastic soft-label matrix (module inits it to zeros;
    # use a non-trivial one so the loss is non-zero).
    matrix = jax.nn.softmax(jax.random.normal(km, (C, C), dtype=jnp.float32),
                            axis=-1)

    ref = _reference(x, target, matrix)

    # Default config (single full-batch tile), a multi-tile config that
    # exercises the partial-tile row mask, and the 2-core (v7x) path.
    for kwargs in ({}, {"tile_n": 128}, {"tile_n": 128, "n_cores": 2}):
        out = online_label_smoothing_forward(x, target, matrix, **kwargs)
        jax.block_until_ready(out)
        for got, want in zip(out, ref):
            assert jnp.allclose(got, want, atol=1e-5, rtol=1e-5), kwargs

    print("KERNEL_OK")
</pallas_src>

<mosaic_0001>
module attributes {stable_mosaic.version = 11 : i64} {
  func.func @_ols_kernel(%arg0: i32, %arg1: i32, %arg2: memref<200x10xf32, #tpu.memory_space<vmem>>, %arg3: memref<200x1xi32, #tpu.memory_space<vmem>>, %arg4: memref<1x200xi32, #tpu.memory_space<vmem>>, %arg5: memref<10x10xf32, #tpu.memory_space<vmem>>, %arg6: memref<1x1x10xf32, #tpu.memory_space<vmem>>, %arg7: memref<1x10x10xf32, #tpu.memory_space<vmem>>, %arg8: memref<1x1x10xf32, #tpu.memory_space<vmem>>) attributes {dimension_semantics = [#tpu.dimension_semantics<parallel>, #tpu.dimension_semantics<arbitrary>], iteration_bounds = array<i64: 1, 1>, scalar_prefetch = 0 : i64, scratch_operands = 0 : i64, tpu.core_type = #tpu.core_type<tc>, window_params = [{transform_indices = @transform_0, window_bounds = array<i64: 200, 10>}, {transform_indices = @transform_1, window_bounds = array<i64: 200, 1>}, {transform_indices = @transform_2, window_bounds = array<i64: 1, 200>}, {pipeline_mode = #tpu.pipeline_mode<synchronous>, transform_indices = @transform_3, window_bounds = array<i64: 10, 10>}, {transform_indices = @transform_4, window_bounds = array<i64: 1, 1, 10>}, {transform_indices = @transform_5, window_bounds = array<i64: 1, 10, 10>}, {transform_indices = @transform_6, window_bounds = array<i64: 1, 1, 10>}]} {
    %c0_i32 = arith.constant 0 : i32
    %0 = arith.cmpi eq, %arg1, %c0_i32 : i32
    %1 = arith.extui %0 : i1 to i32
    %c0_i32_0 = arith.constant 0 : i32
    %2 = arith.cmpi ne, %1, %c0_i32_0 : i32
    scf.if %2 {
      %cst_35 = arith.constant 0.000000e+00 : f32
      %85 = vector.broadcast %cst_35 : f32 to vector<1x10xf32>
      %c0_36 = arith.constant 0 : index
      %c0_37 = arith.constant 0 : index
      %c0_38 = arith.constant 0 : index
      %86 = vector.load %arg6[%c0_36, %c0_37, %c0_38] : memref<1x1x10xf32, #tpu.memory_space<vmem>>, vector<1x1x10xf32>
      %87 = vector.shape_cast %86 : vector<1x1x10xf32> to vector<1x10xf32>
      %88 = vector.shape_cast %85 : vector<1x10xf32> to vector<1x1x10xf32>
      tpu.vector_store %arg6[%c0_36, %c0_37, %c0_38], %88 {strides = array<i32>} : memref<1x1x10xf32, #tpu.memory_space<vmem>>, vector<1x1x10xf32>,
      %cst_39 = arith.constant 0.000000e+00 : f32
      %89 = vector.broadcast %cst_39 : f32 to vector<10x10xf32>
      %c0_40 = arith.constant 0 : index
      %c0_41 = arith.constant 0 : index
      %c0_42 = arith.constant 0 : index
      %90 = vector.load %arg7[%c0_40, %c0_41, %c0_42] : memref<1x10x10xf32, #tpu.memory_space<vmem>>, vector<1x10x10xf32>
      %91 = vector.shape_cast %90 : vector<1x10x10xf32> to vector<10x10xf32>
      %92 = vector.shape_cast %89 : vector<10x10xf32> to vector<1x10x10xf32>
      tpu.vector_store %arg7[%c0_40, %c0_41, %c0_42], %92 {strides = array<i32>} : memref<1x10x10xf32, #tpu.memory_space<vmem>>, vector<1x10x10xf32>,
      %cst_43 = arith.constant 0.000000e+00 : f32
      %93 = vector.broadcast %cst_43 : f32 to vector<1x10xf32>
      %c0_44 = arith.constant 0 : index
      %c0_45 = arith.constant 0 : index
      %c0_46 = arith.constant 0 : index
      %94 = vector.load %arg8[%c0_44, %c0_45, %c0_46] : memref<1x1x10xf32, #tpu.memory_space<vmem>>, vector<1x1x10xf32>
      %95 = vector.shape_cast %94 : vector<1x1x10xf32> to vector<1x10xf32>
      %96 = vector.shape_cast %93 : vector<1x10xf32> to vector<1x1x10xf32>
      tpu.vector_store %arg8[%c0_44, %c0_45, %c0_46], %96 {strides = array<i32>} : memref<1x1x10xf32, #tpu.memory_space<vmem>>, vector<1x1x10xf32>,
    } else {
    }
    %c0 = arith.constant 0 : index
    %c0_1 = arith.constant 0 : index
    %3 = vector.load %arg2[%c0, %c0_1] : memref<200x10xf32, #tpu.memory_space<vmem>>, vector<200x10xf32>
    %c0_2 = arith.constant 0 : index
    %c0_3 = arith.constant 0 : index
    %4 = vector.load %arg3[%c0_2, %c0_3] : memref<200x1xi32, #tpu.memory_space<vmem>>, vector<200x1xi32>
    %c0_4 = arith.constant 0 : index
    %c0_5 = arith.constant 0 : index
    %5 = vector.load %arg4[%c0_4, %c0_5] : memref<1x200xi32, #tpu.memory_space<vmem>>, vector<1x200xi32>
    %c0_6 = arith.constant 0 : index
    %c0_7 = arith.constant 0 : index
    %6 = vector.load %arg5[%c0_6, %c0_7] : memref<10x10xf32, #tpu.memory_space<vmem>>, vector<10x10xf32>
    %c1_i32 = arith.constant 1 : i32
    %7 = arith.muli %arg0, %c1_i32 : i32
    %8 = arith.addi %7, %arg1 : i32
    %c200_i32 = arith.constant 200 : i32
    %9 = arith.muli %8, %c200_i32 : i32
    %10 = tpu.iota {dimensions = array<i32: 0>} : vector<200x1xi32>
    %11 = vector.broadcast %9 : i32 to vector<200x1xi32>
    %12 = arith.addi %11, %10 : vector<200x1xi32>
    %c200_i32_8 = arith.constant 200 : i32
    %13 = vector.broadcast %c200_i32_8 : i32 to vector<200x1xi32>
    %14 = arith.cmpi slt, %12, %13 : vector<200x1xi32>
    %cst = arith.constant 0.000000e+00 : f32
    %15 = vector.shape_cast %14 : vector<200x1xi1> to vector<200x1xi1>
    %16 = vector.broadcast %15 : vector<200x1xi1> to vector<200x10xi1>
    %17 = vector.broadcast %cst : f32 to vector<200x10xf32>
    %18 = arith.select %16, %3, %17 : vector<200x10xi1>, vector<200x10xf32>
    %19 = tpu.iota {dimensions = array<i32: 1>} : vector<200x10xi32>
    %20 = vector.broadcast %4 : vector<200x1xi32> to vector<200x10xi32>
    %21 = arith.cmpi eq, %19, %20 : vector<200x10xi32>
    %22 = arith.extui %21 : vector<200x10xi1> to vector<200x10xi32>
    %23 = arith.sitofp %22 : vector<200x10xi32> to vector<200x10xf32>
    %cst_9 = arith.constant dense<0xFF800000> : vector<200xf32>
    %24 = vector.multi_reduction <maximumf>, %18, %cst_9 [1] : vector<200x10xf32> to vector<200xf32>
    %25 = vector.shape_cast %24 : vector<200xf32> to vector<200x1xf32>
    %26 = vector.broadcast %25 : vector<200x1xf32> to vector<200x10xf32>
    %27 = arith.subf %18, %26 : vector<200x10xf32>
    %28 = math.exp %27 : vector<200x10xf32>
    %cst_10 = arith.constant dense<0.000000e+00> : vector<200xf32>
    %29 = vector.multi_reduction <add>, %28, %cst_10 [1] : vector<200x10xf32> to vector<200xf32>
    %30 = vector.shape_cast %29 : vector<200xf32> to vector<200x1xf32>
    %31 = math.log %30 : vector<200x1xf32>
    %32 = tpu.reciprocal %30 : vector<200x1xf32> -> vector<200x1xf32>
    %33 = vector.broadcast %32 : vector<200x1xf32> to vector<200x10xf32>
    %34 = arith.mulf %28, %33 : vector<200x10xf32>
    %cst_11 = arith.constant dense<0.000000e+00> : vector<200x10xf32>
    %35 = tpu.matmul %23, %6, %cst_11 {dimension_numbers = #tpu.dot_dimension_numbers<[1], [0], [0], [1], [0, 0, 1, 1], [], []>} : vector<200x10xf32>, vector<10x10xf32>, vector<200x10xf32> -> vector<200x10xf32>
    %36 = vector.broadcast %31 : vector<200x1xf32> to vector<200x10xf32>
    %37 = arith.subf %36, %27 : vector<200x10xf32>
    %38 = arith.mulf %35, %37 : vector<200x10xf32>
    %cst_12 = arith.constant 0.000000e+00 : f32
    %39 = vector.shape_cast %14 : vector<200x1xi1> to vector<200x1xi1>
    %40 = vector.broadcast %39 : vector<200x1xi1> to vector<200x10xi1>
    %41 = vector.broadcast %cst_12 : f32 to vector<200x10xf32>
    %42 = arith.select %40, %38, %41 : vector<200x10xi1>, vector<200x10xf32>
    %c0_13 = arith.constant 0 : index
    %c0_14 = arith.constant 0 : index
    %c0_15 = arith.constant 0 : index
    %43 = vector.load %arg6[%c0_13, %c0_14, %c0_15] : memref<1x1x10xf32, #tpu.memory_space<vmem>>, vector<1x1x10xf32>
    %44 = vector.shape_cast %43 : vector<1x1x10xf32> to vector<1x10xf32>
    %cst_16 = arith.constant dense<0.000000e+00> : vector<10xf32>
    %45 = vector.multi_reduction <add>, %42, %cst_16 [0] : vector<200x10xf32> to vector<10xf32>
    %46 = vector.shape_cast %45 : vector<10xf32> to vector<1x10xf32>
    %47 = arith.addf %44, %46 : vector<1x10xf32>
    %c0_17 = arith.constant 0 : index
    %c0_18 = arith.constant 0 : index
    %c0_19 = arith.constant 0 : index
    %48 = vector.load %arg6[%c0_17, %c0_18, %c0_19] : memref<1x1x10xf32, #tpu.memory_space<vmem>>, vector<1x1x10xf32>
    %49 = vector.shape_cast %48 : vector<1x1x10xf32> to vector<1x10xf32>
    %50 = vector.shape_cast %47 : vector<1x10xf32> to vector<1x1x10xf32>
    tpu.vector_store %arg6[%c0_17, %c0_18, %c0_19], %50 {strides = array<i32>} : memref<1x1x10xf32, #tpu.memory_space<vmem>>, vector<1x1x10xf32>,
    %51 = vector.broadcast %25 : vector<200x1xf32> to vector<200x10xf32>
    %52 = arith.cmpf oge, %18, %51 : vector<200x10xf32>
    %c10_i32 = arith.constant 10 : i32
    %53 = vector.broadcast %c10_i32 : i32 to vector<200x10xi32>
    %54 = arith.select %52, %19, %53 : vector<200x10xi1>, vector<200x10xi32>
    %cst_20 = arith.constant dense<2147483647> : vector<200xi32>
    %55 = vector.multi_reduction <minsi>, %54, %cst_20 [1] : vector<200x10xi32> to vector<200xi32>
    %56 = vector.shape_cast %55 : vector<200xi32> to vector<200x1xi32>
    %57 = arith.cmpi eq, %56, %4 : vector<200x1xi32>
    %58 = arith.andi %57, %14 : vector<200x1xi1>
    %59 = arith.extui %58 : vector<200x1xi1> to vector<200x1xi32>
    %60 = arith.sitofp %59 : vector<200x1xi32> to vector<200x1xf32>
    %61 = vector.broadcast %60 : vector<200x1xf32> to vector<200x10xf32>
    %62 = arith.mulf %34, %61 : vector<200x10xf32>
    %63 = tpu.iota {dimensions = array<i32: 0>} : vector<10x200xi32>
    %64 = vector.broadcast %5 : vector<1x200xi32> to vector<10x200xi32>
    %65 = arith.cmpi eq, %63, %64 : vector<10x200xi32>
    %66 = arith.extui %65 : vector<10x200xi1> to vector<10x200xi32>
    %67 = arith.sitofp %66 : vector<10x200xi32> to vector<10x200xf32>
    %c0_21 = arith.constant 0 : index
    %c0_22 = arith.constant 0 : index
    %c0_23 = arith.constant 0 : index
    %68 = vector.load %arg7[%c0_21, %c0_22, %c0_23] : memref<1x10x10xf32, #tpu.memory_space<vmem>>, vector<1x10x10xf32>
    %69 = vector.shape_cast %68 : vector<1x10x10xf32> to vector<10x10xf32>
    %cst_24 = arith.constant dense<0.000000e+00> : vector<10x10xf32>
    %70 = tpu.matmul %67, %62, %cst_24 {dimension_numbers = #tpu.dot_dimension_numbers<[1], [0], [0], [1], [0, 0, 1, 1], [], []>} : vector<10x200xf32>, vector<200x10xf32>, vector<10x10xf32> -> vector<10x10xf32>
    %71 = arith.addf %69, %70 : vector<10x10xf32>
    %c0_25 = arith.constant 0 : index
    %c0_26 = arith.constant 0 : index
    %c0_27 = arith.constant 0 : index
    %72 = vector.load %arg7[%c0_25, %c0_26, %c0_27] : memref<1x10x10xf32, #tpu.memory_space<vmem>>, vector<1x10x10xf32>
    %73 = vector.shape_cast %72 : vector<1x10x10xf32> to vector<10x10xf32>
    %74 = vector.shape_cast %71 : vector<10x10xf32> to vector<1x10x10xf32>
    tpu.vector_store %arg7[%c0_25, %c0_26, %c0_27], %74 {strides = array<i32>} : memref<1x10x10xf32, #tpu.memory_space<vmem>>, vector<1x10x10xf32>,
    %c0_28 = arith.constant 0 : index
    %c0_29 = arith.constant 0 : index
    %c0_30 = arith.constant 0 : index
    %75 = vector.load %arg8[%c0_28, %c0_29, %c0_30] : memref<1x1x10xf32, #tpu.memory_space<vmem>>, vector<1x1x10xf32>
    %76 = vector.shape_cast %75 : vector<1x1x10xf32> to vector<1x10xf32>
    %77 = vector.broadcast %60 : vector<200x1xf32> to vector<200x10xf32>
    %78 = arith.mulf %23, %77 : vector<200x10xf32>
    %cst_31 = arith.constant dense<0.000000e+00> : vector<10xf32>
    %79 = vector.multi_reduction <add>, %78, %cst_31 [0] : vector<200x10xf32> to vector<10xf32>
    %80 = vector.shape_cast %79 : vector<10xf32> to vector<1x10xf32>
    %81 = arith.addf %76, %80 : vector<1x10xf32>
    %c0_32 = arith.constant 0 : index
    %c0_33 = arith.constant 0 : index
    %c0_34 = arith.constant 0 : index
    %82 = vector.load %arg8[%c0_32, %c0_33, %c0_34] : memref<1x1x10xf32, #tpu.memory_space<vmem>>, vector<1x1x10xf32>
    %83 = vector.shape_cast %82 : vector<1x1x10xf32> to vector<1x10xf32>
    %84 = vector.shape_cast %81 : vector<1x10xf32> to vector<1x1x10xf32>
    tpu.vector_store %arg8[%c0_32, %c0_33, %c0_34], %84 {strides = array<i32>} : memref<1x1x10xf32, #tpu.memory_space<vmem>>, vector<1x1x10xf32>,
    return
  }
  func.func @transform_0(%arg0: i32, %arg1: i32) -> (i32, i32) {
    %c1_i32 = arith.constant 1 : i32
    %0 = arith.muli %arg0, %c1_i32 : i32
    %1 = arith.addi %0, %arg1 : i32
    %c0_i32 = arith.constant 0 : i32
    %2 = arith.minsi %1, %c0_i32 : i32
    %c0_i32_0 = arith.constant 0 : i32
    %c0_i32_1 = arith.constant 0 : i32
    return %2, %c0_i32_0 : i32, i32
  }
  func.func @transform_1(%arg0: i32, %arg1: i32) -> (i32, i32) {
    %c1_i32 = arith.constant 1 : i32
    %0 = arith.muli %arg0, %c1_i32 : i32
    %1 = arith.addi %0, %arg1 : i32
    %c0_i32 = arith.constant 0 : i32
    %2 = arith.minsi %1, %c0_i32 : i32
    %c0_i32_0 = arith.constant 0 : i32
    %c0_i32_1 = arith.constant 0 : i32
    return %2, %c0_i32_0 : i32, i32
  }
  func.func @transform_2(%arg0: i32, %arg1: i32) -> (i32, i32) {
    %c1_i32 = arith.constant 1 : i32
    %0 = arith.muli %arg0, %c1_i32 : i32
    %1 = arith.addi %0, %arg1 : i32
    %c0_i32 = arith.constant 0 : i32
    %2 = arith.minsi %1, %c0_i32 : i32
    %c0_i32_0 = arith.constant 0 : i32
    %c0_i32_1 = arith.constant 0 : i32
    return %c0_i32_0, %2 : i32, i32
  }
  func.func @transform_3(%arg0: i32, %arg1: i32) -> (i32, i32) {
    %c0_i32 = arith.constant 0 : i32
    %c0_i32_0 = arith.constant 0 : i32
    %c0_i32_1 = arith.constant 0 : i32
    return %c0_i32, %c0_i32_0 : i32, i32
  }
  func.func @transform_4(%arg0: i32, %arg1: i32) -> (i32, i32, i32) {
    %c0_i32 = arith.constant 0 : i32
    %c0_i32_0 = arith.constant 0 : i32
    %c0_i32_1 = arith.constant 0 : i32
    return %arg0, %c0_i32, %c0_i32_0 : i32, i32, i32
  }
  func.func @transform_5(%arg0: i32, %arg1: i32) -> (i32, i32, i32) {
    %c0_i32 = arith.constant 0 : i32
    %c0_i32_0 = arith.constant 0 : i32
    %c0_i32_1 = arith.constant 0 : i32
    return %arg0, %c0_i32, %c0_i32_0 : i32, i32, i32
  }
  func.func @transform_6(%arg0: i32, %arg1: i32) -> (i32, i32, i32) {
    %c0_i32 = arith.constant 0 : i32
    %c0_i32_0 = arith.constant 0 : i32
    %c0_i32_1 = arith.constant 0 : i32
    return %arg0, %c0_i32, %c0_i32_0 : i32, i32, i32
  }
}

</mosaic_0001>

<llo_original>
// kernel: online_label_smoothing_forward.1
$region0: #{online_label_smoothing_forward.1}
  #allocation0 [shape = 'u32[]', space=smem, size = 0x4, offset = 0x4, fixed_abs, tag = 'smem constant byte address 0x4 - core index']
  #allocation1 [shape = 'u32[144,128]{1,0:T(1,128)}', space=vmem, size = 0x12000, scoped, tag = 'internal scratch']
  %s0 = inlined_call_operand.vmem [shape: f32[200,10], index: 0, kind: input, shape index: {}]
  %s1 = inlined_call_operand.vmem [shape: s32[200,1], index: 1, kind: input, shape index: {}]
  %s2 = inlined_call_operand.vmem [shape: s32[1,200], index: 2, kind: input, shape index: {}]
  %s3 = inlined_call_operand.vmem [shape: f32[10,10], index: 3, kind: input, shape index: {}]
  %s4 = inlined_call_operand.vmem [shape: f32[1,1,10], index: 4, kind: output, shape index: {0}]
  %s5 = inlined_call_operand.hbm [shape: f32[1,10,10], index: 5, kind: output, shape index: {1}]
  %s6 = inlined_call_operand.hbm [shape: f32[1,1,10], index: 6, kind: output, shape index: {2}]
  %7 = xla_tuple %s4, %s5, %s6
  %s8 = sld [smem:[#allocation0]]
  $region46: #{online_label_smoothing_forward.1} parent=0
    _
  %s10 = ssub.s32 1, %s8
  %s11 = scalar_select 0, %s10, %s8
  $region1: #{online_label_smoothing_forward.1} parent=0
    #allocation2 [shape = 'u8[8192]{0}', space=vmem, size = 0x2000, scoped, tag = 'output window, operand 1, single buffered']
    #allocation3 [shape = 's32[1]{0}', space=sflag, size = 0x4, scoped, tag = 'scoped memory for online_label_smoothing_forward.1']
    #allocation4 [shape = 'u8[512]{0}', space=vmem, size = 0x400, scoped, tag = 'output window, operand 2, single buffered']
    #allocation5 [shape = 's32[1]{0}', space=sflag, size = 0x4, scoped, tag = 'scoped memory for online_label_smoothing_forward.1']
    %12 = vsyncpa [#allocation3], 0
    %13 = vsyncpa [#allocation5], 0
    // Predicated region
    $region2: #{online_label_smoothing_forward.1} parent=1 // pred_check
      _
    $region3: #{online_label_smoothing_forward.1} parent=1 // pred_check_branch
      %15 = sbr.rel (0) target = $region5
    $region4: #{online_label_smoothing_forward.1} parent=1 // pred_region
      %s16 = sadd.s32 0, 0
      %p17 = scmp.lt.s32.totalorder %s16, 0
      %s18 = scalar_select %p17, %s16, 0
      %s19 = smul.u32 25, %s18
      %p20 = scmp.lt.s32.totalorder %s19, 24
      %s21 = scalar_select %p20, %s19, 24
      %s22 = smul.addr %s21, 8
      %s23 = scalar_lea.vmem %s0, %s22
      %s24 = sadd.s32 0, 0
      %p25 = scmp.lt.s32.totalorder %s24, 0
      %s26 = scalar_select %p25, %s24, 0
      %s27 = smul.u32 25, %s26
    $region5: #{online_label_smoothing_forward.1} parent=1 // pred_fallthru
      _
    // Predicated region
    $region6: #{online_label_smoothing_forward.1} parent=1 // pred_check
      _
    $region7: #{online_label_smoothing_forward.1} parent=1 // pred_check_branch
      %29 = sbr.rel (0) target = $region9
    $region8: #{online_label_smoothing_forward.1} parent=1 // pred_region
      %s30 = sadd.s32 0, 0
      %p31 = scmp.lt.s32.totalorder %s30, 0
      %s32 = scalar_select %p31, %s30, 0
      %s33 = smul.u32 25, %s32
      %p34 = scmp.lt.s32.totalorder %s33, 24
      %s35 = scalar_select %p34, %s33, 24
      %s36 = smul.addr %s35, 8
      %s37 = scalar_lea.vmem %s1, %s36
      %s38 = sadd.s32 0, 0
      %p39 = scmp.lt.s32.totalorder %s38, 0
      %s40 = scalar_select %p39, %s38, 0
      %s41 = smul.u32 25, %s40
    $region9: #{online_label_smoothing_forward.1} parent=1 // pred_fallthru
      _
    // Predicated region
    $region10: #{online_label_smoothing_forward.1} parent=1 // pred_check
      _
    $region11: #{online_label_smoothing_forward.1} parent=1 // pred_check_branch
      %43 = sbr.rel (0) target = $region13
    $region12: #{online_label_smoothing_forward.1} parent=1 // pred_region
      %s44 = sadd.s32 0, 0
      %p45 = scmp.lt.s32.totalorder %s44, 0
      %s46 = scalar_select %p45, %s44, 0
      %s47 = smul.u32 2, %s46
      %p48 = scmp.lt.s32.totalorder %s47, 1
      %s49 = scalar_select %p48, %s47, 1
      %s50 = scalar_lea.vmem %s2, %s49
      %s51 = sadd.s32 0, 0
      %p52 = scmp.lt.s32.totalorder %s51, 0
      %s53 = scalar_select %p52, %s51, 0
      %s54 = smul.u32 2, %s53
    $region13: #{online_label_smoothing_forward.1} parent=1 // pred_fallthru
      _
    // Predicated region
    $region14: #{online_label_smoothing_forward.1} parent=1 // pred_check
      _
    $region15: #{online_label_smoothing_forward.1} parent=1 // pred_check_branch
      %56 = sbr.rel (0) target = $region17
    $region16: #{online_label_smoothing_forward.1} parent=1 // pred_region
      _
    $region17: #{online_label_smoothing_forward.1} parent=1 // pred_fallthru
      _
    %s57 = sadd.s32 0, 0
    %p58 = scmp.lt.s32.totalorder %s57, 0
    %s59 = scalar_select %p58, %s57, 0
    %s60 = smul.u32 25, %s59
    %p61 = scmp.lt.s32.totalorder %s60, 24
    %s62 = scalar_select %p61, %s60, 24
    %s63 = smul.addr %s62, 8
    %s64 = scalar_lea.vmem %s0, %s63
    %s65 = sadd.s32 0, 0
    %p66 = scmp.lt.s32.totalorder %s65, 0
    %s67 = scalar_select %p66, %s65, 0
    %s68 = smul.u32 25, %s67
    %p69 = scmp.lt.s32.totalorder %s68, 24
    %s70 = scalar_select %p69, %s68, 24
    %s71 = smul.addr %s70, 8
    %s72 = scalar_lea.vmem %s1, %s71
    %s73 = sadd.s32 0, 0
    %p74 = scmp.lt.s32.totalorder %s73, 0
    %s75 = scalar_select %p74, %s73, 0
    %s76 = smul.u32 2, %s75
    %p77 = scmp.lt.s32.totalorder %s76, 1
    %s78 = scalar_select %p77, %s76, 1
    %s79 = scalar_lea.vmem %s2, %s78
    %s80 = sadd.s32 0, 0
    %p81 = scmp.lt.s32.totalorder %s80, 0
    %s82 = scalar_select %p81, %s80, 0
    %s83 = smul.u32 25, %s82
    %p84 = scmp.lt.s32.totalorder %s83, 24
    %s85 = scalar_select %p84, %s83, 24
    %s86 = smul.addr %s85, 8
    %s87 = scalar_lea.vmem %s0, %s86
    %s88 = sadd.s32 0, 0
    %p89 = scmp.lt.s32.totalorder %s88, 0
    %s90 = scalar_select %p89, %s88, 0
    %s91 = smul.u32 25, %s90
    %s92 = sadd.s32 0, 0
    %p93 = scmp.lt.s32.totalorder %s92, 0
    %s94 = scalar_select %p93, %s92, 0
    %s95 = smul.u32 25, %s94
    %p96 = scmp.lt.s32.totalorder %s95, 24
    %s97 = scalar_select %p96, %s95, 24
    %s98 = smul.addr %s97, 8
    %s99 = scalar_lea.vmem %s1, %s98
    %s100 = sadd.s32 0, 0
    %p101 = scmp.lt.s32.totalorder %s100, 0
    %s102 = scalar_select %p101, %s100, 0
    %s103 = smul.u32 25, %s102
    %s104 = sadd.s32 0, 0
    %p105 = scmp.lt.s32.totalorder %s104, 0
    %s106 = scalar_select %p105, %s104, 0
    %s107 = smul.u32 2, %s106
    %p108 = scmp.lt.s32.totalorder %s107, 1
    %s109 = scalar_select %p108, %s107, 1
    %s110 = scalar_lea.vmem %s2, %s109
    %s111 = sadd.s32 0, 0
    %p112 = scmp.lt.s32.totalorder %s111, 0
    %s113 = scalar_select %p112, %s111, 0
    %s114 = smul.u32 2, %s113
    %p115 = scmp.eq.s32.totalorder 0, 0
    // Predicated region
    $region18: #{online_label_smoothing_forward.1} parent=1 // pred_check
      %p116 = pneg %p115
    $region19: #{online_label_smoothing_forward.1} parent=1 // pred_check_branch
      %118 = sbr.rel (%p116) target = $region21
    $region20: #{online_label_smoothing_forward.1} parent=1 // pred_region
      %vm119 = vcmask 73728
      %120 = vst.msk [vmem:[%s4] sm:$0x1] %vm119, 0.0
      %vm121 = vcmask 80896
      %122 = vst.msk [vmem:[#allocation2] sm:$0xff] %vm121, 0.0
      %vm123 = vcmask 74752
      %124 = vst.msk [vmem:[#allocation2 + $0x8] sm:$0x3] %vm123, 0.0
      %125 = vst.msk [vmem:[#allocation4] sm:$0x1] %vm119, 0.0
    $region21: #{online_label_smoothing_forward.1} parent=1 // pred_fallthru
      _
    %v126 = vld [vmem:[%s87] sm:$0xff]
    %v127 = vld [vmem:[%s87 + $0x8] sm:$0xff]
    %v128 = vld [vmem:[%s87 + $0x10] sm:$0xff]
    %v129 = vld [vmem:[%s87 + $0x18] sm:$0xff]
    %v130 = vld [vmem:[%s87 + $0x20] sm:$0xff]
    %v131 = vld [vmem:[%s87 + $0x28] sm:$0xff]
    %v132 = vld [vmem:[%s87 + $0x30] sm:$0xff]
    %v133 = vld [vmem:[%s87 + $0x38] sm:$0xff]
    %v134 = vld [vmem:[%s87 + $0x40] sm:$0xff]
    %v135 = vld [vmem:[%s87 + $0x48] sm:$0xff]
    %v136 = vld [vmem:[%s87 + $0x50] sm:$0xff]
    %v137 = vld [vmem:[%s87 + $0x58] sm:$0xff]
    %v138 = vld [vmem:[%s87 + $0x60] sm:$0xff]
    %v139 = vld [vmem:[%s87 + $0x68] sm:$0xff]
    %v140 = vld [vmem:[%s87 + $0x70] sm:$0xff]
    %v141 = vld [vmem:[%s87 + $0x78] sm:$0xff]
    %v142 = vld [vmem:[%s87 + $0x80] sm:$0xff]
    %v143 = vld [vmem:[%s87 + $0x88] sm:$0xff]
    %v144 = vld [vmem:[%s87 + $0x90] sm:$0xff]
    %v145 = vld [vmem:[%s87 + $0x98] sm:$0xff]
    %v146 = vld [vmem:[%s87 + $0xa0] sm:$0xff]
    %v147 = vld [vmem:[%s87 + $0xa8] sm:$0xff]
    %v148 = vld [vmem:[%s87 + $0xb0] sm:$0xff]
    %v149 = vld [vmem:[%s87 + $0xb8] sm:$0xff]
    %v150 = vld [vmem:[%s87 + $0xc0] sm:$0xff]
    %v151 = vld [vmem:[%s99] sm:$0xff]
    %v152 = vld [vmem:[%s99 + $0x8] sm:$0xff]
    %v153 = vld [vmem:[%s99 + $0x10] sm:$0xff]
    %v154 = vld [vmem:[%s99 + $0x18] sm:$0xff]
    %v155 = vld [vmem:[%s99 + $0x20] sm:$0xff]
    %v156 = vld [vmem:[%s99 + $0x28] sm:$0xff]
    %v157 = vld [vmem:[%s99 + $0x30] sm:$0xff]
    %v158 = vld [vmem:[%s99 + $0x38] sm:$0xff]
    %v159 = vld [vmem:[%s99 + $0x40] sm:$0xff]
    %v160 = vld [vmem:[%s99 + $0x48] sm:$0xff]
    %v161 = vld [vmem:[%s99 + $0x50] sm:$0xff]
    %v162 = vld [vmem:[%s99 + $0x58] sm:$0xff]
    %v163 = vld [vmem:[%s99 + $0x60] sm:$0xff]
    %v164 = vld [vmem:[%s99 + $0x68] sm:$0xff]
    %v165 = vld [vmem:[%s99 + $0x70] sm:$0xff]
    %v166 = vld [vmem:[%s99 + $0x78] sm:$0xff]
    %v167 = vld [vmem:[%s99 + $0x80] sm:$0xff]
    %v168 = vld [vmem:[%s99 + $0x88] sm:$0xff]
    %v169 = vld [vmem:[%s99 + $0x90] sm:$0xff]
    %v170 = vld [vmem:[%s99 + $0x98] sm:$0xff]
    %v171 = vld [vmem:[%s99 + $0xa0] sm:$0xff]
    %v172 = vld [vmem:[%s99 + $0xa8] sm:$0xff]
    %v173 = vld [vmem:[%s99 + $0xb0] sm:$0xff]
    %v174 = vld [vmem:[%s99 + $0xb8] sm:$0xff]
    %v175 = vld [vmem:[%s99 + $0xc0] sm:$0xff]
    %v176 = vld [vmem:[%s110] sm:$0x3]
    %v177 = vld [vmem:[%s3] sm:$0xff]
    %v178 = vld [vmem:[%s3 + $0x8] sm:$0x3]
    %s179 = sadd.s32 0, 0
    %s180 = smul.u32 %s179, 200
    %v181 = vlaneseq
    %v182 = vshrl.u32 %v181, 7
    %v183 = vadd.s32 %v182, 8
    %v184 = vadd.s32 %v182, 16
    %v185 = vadd.s32 %v182, 24
    %v186 = vadd.s32 %v182, 32
    %v187 = vadd.s32 %v182, 40
    %v188 = vadd.s32 %v182, 48
    %v189 = vadd.s32 %v182, 56
    %v190 = vadd.s32 %v182, 64
    %v191 = vadd.s32 %v182, 72
    %v192 = vadd.s32 %v182, 80
    %v193 = vadd.s32 %v182, 88
    %v194 = vadd.s32 %v182, 96
    %v195 = vadd.s32 %v182, 104
    %v196 = vadd.s32 %v182, 112
    %v197 = vadd.s32 %v182, 120
    %v198 = vadd.s32 %v182, 128
    %v199 = vadd.s32 %v182, 136
    %v200 = vadd.s32 %v182, 144
    %v201 = vadd.s32 %v182, 152
    %v202 = vadd.s32 %v182, 160
    %v203 = vadd.s32 %v182, 168
    %v204 = vadd.s32 %v182, 176
    %v205 = vadd.s32 %v182, 184
    %v206 = vadd.s32 %v182, 192
    %v207 = vstv %s180
    %v208 = vadd.s32 %v207, %v182
    %v209 = vadd.s32 %v207, %v183
    %v210 = vadd.s32 %v207, %v184
    %v211 = vadd.s32 %v207, %v185
    %v212 = vadd.s32 %v207, %v186
    %v213 = vadd.s32 %v207, %v187
    %v214 = vadd.s32 %v207, %v188
    %v215 = vadd.s32 %v207, %v189
    %v216 = vadd.s32 %v207, %v190
    %v217 = vadd.s32 %v207, %v191
    %v218 = vadd.s32 %v207, %v192
    %v219 = vadd.s32 %v207, %v193
    %v220 = vadd.s32 %v207, %v194
    %v221 = vadd.s32 %v207, %v195
    %v222 = vadd.s32 %v207, %v196
    %v223 = vadd.s32 %v207, %v197
    %v224 = vadd.s32 %v207, %v198
    %v225 = vadd.s32 %v207, %v199
    %v226 = vadd.s32 %v207, %v200
    %v227 = vadd.s32 %v207, %v201
    %v228 = vadd.s32 %v207, %v202
    %v229 = vadd.s32 %v207, %v203
    %v230 = vadd.s32 %v207, %v204
    %v231 = vadd.s32 %v207, %v205
    %v232 = vadd.s32 %v207, %v206
    %vm233 = vcmp.lt.s32.totalorder %v208, 200
    %vm234 = vcmp.lt.s32.totalorder %v209, 200
    %vm235 = vcmp.lt.s32.totalorder %v210, 200
    %vm236 = vcmp.lt.s32.totalorder %v211, 200
    %vm237 = vcmp.lt.s32.totalorder %v212, 200
    %vm238 = vcmp.lt.s32.totalorder %v213, 200
    %vm239 = vcmp.lt.s32.totalorder %v214, 200
    %vm240 = vcmp.lt.s32.totalorder %v215, 200
    %vm241 = vcmp.lt.s32.totalorder %v216, 200
    %vm242 = vcmp.lt.s32.totalorder %v217, 200
    %vm243 = vcmp.lt.s32.totalorder %v218, 200
    %vm244 = vcmp.lt.s32.totalorder %v219, 200
    %vm245 = vcmp.lt.s32.totalorder %v220, 200
    %vm246 = vcmp.lt.s32.totalorder %v221, 200
    %vm247 = vcmp.lt.s32.totalorder %v222, 200
    %vm248 = vcmp.lt.s32.totalorder %v223, 200
    %vm249 = vcmp.lt.s32.totalorder %v224, 200
    %vm250 = vcmp.lt.s32.totalorder %v225, 200
    %vm251 = vcmp.lt.s32.totalorder %v226, 200
    %vm252 = vcmp.lt.s32.totalorder %v227, 200
    %vm253 = vcmp.lt.s32.totalorder %v228, 200
    %vm254 = vcmp.lt.s32.totalorder %v229, 200
    %vm255 = vcmp.lt.s32.totalorder %v230, 200
    %vm256 = vcmp.lt.s32.totalorder %v231, 200
    %vm257 = vcmp.lt.s32.totalorder %v232, 200
    %v258 = vsel %vm233, 1, 0
    %v259 = vsel %vm234, 1, 0
    %v260 = vsel %vm235, 1, 0
    %v261 = vsel %vm236, 1, 0
    %v262 = vsel %vm237, 1, 0
    %v263 = vsel %vm238, 1, 0
    %v264 = vsel %vm239, 1, 0
    %v265 = vsel %vm240, 1, 0
    %v266 = vsel %vm241, 1, 0
    %v267 = vsel %vm242, 1, 0
    %v268 = vsel %vm243, 1, 0
    %v269 = vsel %vm244, 1, 0
    %v270 = vsel %vm245, 1, 0
    %v271 = vsel %vm246, 1, 0
    %v272 = vsel %vm247, 1, 0
    %v273 = vsel %vm248, 1, 0
    %v274 = vsel %vm249, 1, 0
    %v275 = vsel %vm250, 1, 0
    %v276 = vsel %vm251, 1, 0
    %v277 = vsel %vm252, 1, 0
    %v278 = vsel %vm253, 1, 0
    %v279 = vsel %vm254, 1, 0
    %v280 = vsel %vm255, 1, 0
    %v281 = vsel %vm256, 1, 0
    %v282 = vsel %vm257, 1, 0
    %vm283 = vcmp.eq.s32.totalorder %v258, 1
    %vm284 = vcmp.eq.s32.totalorder %v259, 1
    %vm285 = vcmp.eq.s32.totalorder %v260, 1
    %vm286 = vcmp.eq.s32.totalorder %v261, 1
    %vm287 = vcmp.eq.s32.totalorder %v262, 1
    %vm288 = vcmp.eq.s32.totalorder %v263, 1
    %vm289 = vcmp.eq.s32.totalorder %v264, 1
    %vm290 = vcmp.eq.s32.totalorder %v265, 1
    %vm291 = vcmp.eq.s32.totalorder %v266, 1
    %vm292 = vcmp.eq.s32.totalorder %v267, 1
    %vm293 = vcmp.eq.s32.totalorder %v268, 1
    %vm294 = vcmp.eq.s32.totalorder %v269, 1
    %vm295 = vcmp.eq.s32.totalorder %v270, 1
    %vm296 = vcmp.eq.s32.totalorder %v271, 1
    %vm297 = vcmp.eq.s32.totalorder %v272, 1
    %vm298 = vcmp.eq.s32.totalorder %v273, 1
    %vm299 = vcmp.eq.s32.totalorder %v274, 1
    %vm300 = vcmp.eq.s32.totalorder %v275, 1
    %vm301 = vcmp.eq.s32.totalorder %v276, 1
    %vm302 = vcmp.eq.s32.totalorder %v277, 1
    %vm303 = vcmp.eq.s32.totalorder %v278, 1
    %vm304 = vcmp.eq.s32.totalorder %v279, 1
    %vm305 = vcmp.eq.s32.totalorder %v280, 1
    %vm306 = vcmp.eq.s32.totalorder %v281, 1
    %vm307 = vcmp.eq.s32.totalorder %v282, 1
    %v308 = vsel %vm283, %v126, 0.0
    %v309 = vsel %vm284, %v127, 0.0
    %v310 = vsel %vm285, %v128, 0.0
    %v311 = vsel %vm286, %v129, 0.0
    %v312 = vsel %vm287, %v130, 0.0
    %v313 = vsel %vm288, %v131, 0.0
    %v314 = vsel %vm289, %v132, 0.0
    %v315 = vsel %vm290, %v133, 0.0
    %v316 = vsel %vm291, %v134, 0.0
    %v317 = vsel %vm292, %v135, 0.0
    %v318 = vsel %vm293, %v136, 0.0
    %v319 = vsel %vm294, %v137, 0.0
    %v320 = vsel %vm295, %v138, 0.0
    %v321 = vsel %vm296, %v139, 0.0
    %v322 = vsel %vm297, %v140, 0.0
    %v323 = vsel %vm298, %v141, 0.0
    %v324 = vsel %vm299, %v142, 0.0
    %v325 = vsel %vm300, %v143, 0.0
    %v326 = vsel %vm301, %v144, 0.0
    %v327 = vsel %vm302, %v145, 0.0
    %v328 = vsel %vm303, %v146, 0.0
    %v329 = vsel %vm304, %v147, 0.0
    %v330 = vsel %vm305, %v148, 0.0
    %v331 = vsel %vm306, %v149, 0.0
    %v332 = vsel %vm307, %v150, 0.0
    %v333 = vlaneseq
    %v334 = vand.u32 %v333, 127
    %335 = vset.pattern.permute.xlu0 0
    %336 = vperm.xlu0 %335, %v151
    %v337 = vpop.permute.xlu0 %336
    %338 = vset.pattern.permute.xlu0 0
    %339 = vperm.xlu0 %338, %v152
    %v340 = vpop.permute.xlu0 %339
    %341 = vset.pattern.permute.xlu0 0
    %342 = vperm.xlu0 %341, %v153
    %v343 = vpop.permute.xlu0 %342
    %344 = vset.pattern.permute.xlu0 0
    %345 = vperm.xlu0 %344, %v154
    %v346 = vpop.permute.xlu0 %345
    %347 = vset.pattern.permute.xlu0 0
    %348 = vperm.xlu0 %347, %v155
    %v349 = vpop.permute.xlu0 %348
    %350 = vset.pattern.permute.xlu0 0
    %351 = vperm.xlu0 %350, %v156
    %v352 = vpop.permute.xlu0 %351
    %353 = vset.pattern.permute.xlu0 0
    %354 = vperm.xlu0 %353, %v157
    %v355 = vpop.permute.xlu0 %354
    %356 = vset.pattern.permute.xlu0 0
    %357 = vperm.xlu0 %356, %v158
    %v358 = vpop.permute.xlu0 %357
    %359 = vset.pattern.permute.xlu0 0
    %360 = vperm.xlu0 %359, %v159
    %v361 = vpop.permute.xlu0 %360
    %362 = vset.pattern.permute.xlu0 0
    %363 = vperm.xlu0 %362, %v160
    %v364 = vpop.permute.xlu0 %363
    %365 = vset.pattern.permute.xlu0 0
    %366 = vperm.xlu0 %365, %v161
    %v367 = vpop.permute.xlu0 %366
    %368 = vset.pattern.permute.xlu0 0
    %369 = vperm.xlu0 %368, %v162
    %v370 = vpop.permute.xlu0 %369
    %371 = vset.pattern.permute.xlu0 0
    %372 = vperm.xlu0 %371, %v163
    %v373 = vpop.permute.xlu0 %372
    %374 = vset.pattern.permute.xlu0 0
    %375 = vperm.xlu0 %374, %v164
    %v376 = vpop.permute.xlu0 %375
    %377 = vset.pattern.permute.xlu0 0
    %378 = vperm.xlu0 %377, %v165
    %v379 = vpop.permute.xlu0 %378
    %380 = vset.pattern.permute.xlu0 0
    %381 = vperm.xlu0 %380, %v166
    %v382 = vpop.permute.xlu0 %381
    %383 = vset.pattern.permute.xlu0 0
    %384 = vperm.xlu0 %383, %v167
    %v385 = vpop.permute.xlu0 %384
    %386 = vset.pattern.permute.xlu0 0
    %387 = vperm.xlu0 %386, %v168
    %v388 = vpop.permute.xlu0 %387
    %389 = vset.pattern.permute.xlu0 0
    %390 = vperm.xlu0 %389, %v169
    %v391 = vpop.permute.xlu0 %390
    %392 = vset.pattern.permute.xlu0 0
    %393 = vperm.xlu0 %392, %v170
    %v394 = vpop.permute.xlu0 %393
    %395 = vset.pattern.permute.xlu0 0
    %396 = vperm.xlu0 %395, %v171
    %v397 = vpop.permute.xlu0 %396
    %398 = vset.pattern.permute.xlu0 0
    %399 = vperm.xlu0 %398, %v172
    %v400 = vpop.permute.xlu0 %399
    %401 = vset.pattern.permute.xlu0 0
    %402 = vperm.xlu0 %401, %v173
    %v403 = vpop.permute.xlu0 %402
    %404 = vset.pattern.permute.xlu0 0
    %405 = vperm.xlu0 %404, %v174
    %v406 = vpop.permute.xlu0 %405
    %407 = vset.pattern.permute.xlu0 0
    %408 = vperm.xlu0 %407, %v175
    %v409 = vpop.permute.xlu0 %408
    %vm410 = vcmp.eq.s32.totalorder %v334, %v337
    %vm411 = vcmp.eq.s32.totalorder %v334, %v340
    %vm412 = vcmp.eq.s32.totalorder %v334, %v343
    %vm413 = vcmp.eq.s32.totalorder %v334, %v346
    %vm414 = vcmp.eq.s32.totalorder %v334, %v349
    %vm415 = vcmp.eq.s32.totalorder %v334, %v352
    %vm416 = vcmp.eq.s32.totalorder %v334, %v355
    %vm417 = vcmp.eq.s32.totalorder %v334, %v358
    %vm418 = vcmp.eq.s32.totalorder %v334, %v361
    %vm419 = vcmp.eq.s32.totalorder %v334, %v364
    %vm420 = vcmp.eq.s32.totalorder %v334, %v367
    %vm421 = vcmp.eq.s32.totalorder %v334, %v370
    %vm422 = vcmp.eq.s32.totalorder %v334, %v373
    %vm423 = vcmp.eq.s32.totalorder %v334, %v376
    %vm424 = vcmp.eq.s32.totalorder %v334, %v379
    %vm425 = vcmp.eq.s32.totalorder %v334, %v382
    %vm426 = vcmp.eq.s32.totalorder %v334, %v385
    %vm427 = vcmp.eq.s32.totalorder %v334, %v388
    %vm428 = vcmp.eq.s32.totalorder %v334, %v391
    %vm429 = vcmp.eq.s32.totalorder %v334, %v394
    %vm430 = vcmp.eq.s32.totalorder %v334, %v397
    %vm431 = vcmp.eq.s32.totalorder %v334, %v400
    %vm432 = vcmp.eq.s32.totalorder %v334, %v403
    %vm433 = vcmp.eq.s32.totalorder %v334, %v406
    %vm434 = vcmp.eq.s32.totalorder %v334, %v409
    %v435 = vsel %vm410, 1, 0
    %v436 = vsel %vm411, 1, 0
    %v437 = vsel %vm412, 1, 0
    %v438 = vsel %vm413, 1, 0
    %v439 = vsel %vm414, 1, 0
    %v440 = vsel %vm415, 1, 0
    %v441 = vsel %vm416, 1, 0
    %v442 = vsel %vm417, 1, 0
    %v443 = vsel %vm418, 1, 0
    %v444 = vsel %vm419, 1, 0
    %v445 = vsel %vm420, 1, 0
    %v446 = vsel %vm421, 1, 0
    %v447 = vsel %vm422, 1, 0
    %v448 = vsel %vm423, 1, 0
    %v449 = vsel %vm424, 1, 0
    %v450 = vsel %vm425, 1, 0
    %v451 = vsel %vm426, 1, 0
    %v452 = vsel %vm427, 1, 0
    %v453 = vsel %vm428, 1, 0
    %v454 = vsel %vm429, 1, 0
    %v455 = vsel %vm430, 1, 0
    %v456 = vsel %vm431, 1, 0
    %v457 = vsel %vm432, 1, 0
    %v458 = vsel %vm433, 1, 0
    %v459 = vsel %vm434, 1, 0
    %v460 = vcvt.s32.f32 %v435
    %v461 = vcvt.s32.f32 %v436
    %v462 = vcvt.s32.f32 %v437
    %v463 = vcvt.s32.f32 %v438
    %v464 = vcvt.s32.f32 %v439
    %v465 = vcvt.s32.f32 %v440
    %v466 = vcvt.s32.f32 %v441
    %v467 = vcvt.s32.f32 %v442
    %v468 = vcvt.s32.f32 %v443
    %v469 = vcvt.s32.f32 %v444
    %v470 = vcvt.s32.f32 %v445
    %v471 = vcvt.s32.f32 %v446
    %v472 = vcvt.s32.f32 %v447
    %v473 = vcvt.s32.f32 %v448
    %v474 = vcvt.s32.f32 %v449
    %v475 = vcvt.s32.f32 %v450
    %v476 = vcvt.s32.f32 %v451
    %v477 = vcvt.s32.f32 %v452
    %v478 = vcvt.s32.f32 %v453
    %v479 = vcvt.s32.f32 %v454
    %v480 = vcvt.s32.f32 %v455
    %v481 = vcvt.s32.f32 %v456
    %v482 = vcvt.s32.f32 %v457
    %v483 = vcvt.s32.f32 %v458
    %v484 = vcvt.s32.f32 %v459
    %vm485 = vcmask 80896
    %v486 = vsel %vm485, %v308, -inf
    %487 = vmax.xlane.f32.xlu0 %v486
    %v488 = vpop.xlane.xlu0 %487
    %v489 = vsel %vm485, %v309, -inf
    %490 = vmax.xlane.f32.xlu0 %v489
    %v491 = vpop.xlane.xlu0 %490
    %v492 = vsel %vm485, %v310, -inf
    %493 = vmax.xlane.f32.xlu0 %v492
    %v494 = vpop.xlane.xlu0 %493
    %v495 = vsel %vm485, %v311, -inf
    %496 = vmax.xlane.f32.xlu0 %v495
    %v497 = vpop.xlane.xlu0 %496
    %v498 = vsel %vm485, %v312, -inf
    %499 = vmax.xlane.f32.xlu0 %v498
    %v500 = vpop.xlane.xlu0 %499
    %v501 = vsel %vm485, %v313, -inf
    %502 = vmax.xlane.f32.xlu0 %v501
    %v503 = vpop.xlane.xlu0 %502
    %v504 = vsel %vm485, %v314, -inf
    %505 = vmax.xlane.f32.xlu0 %v504
    %v506 = vpop.xlane.xlu0 %505
    %v507 = vsel %vm485, %v315, -inf
    %508 = vmax.xlane.f32.xlu0 %v507
    %v509 = vpop.xlane.xlu0 %508
    %v510 = vsel %vm485, %v316, -inf
    %511 = vmax.xlane.f32.xlu0 %v510
    %v512 = vpop.xlane.xlu0 %511
    %v513 = vsel %vm485, %v317, -inf
    %514 = vmax.xlane.f32.xlu0 %v513
    %v515 = vpop.xlane.xlu0 %514
    %v516 = vsel %vm485, %v318, -inf
    %517 = vmax.xlane.f32.xlu0 %v516
    %v518 = vpop.xlane.xlu0 %517
    %v519 = vsel %vm485, %v319, -inf
    %520 = vmax.xlane.f32.xlu0 %v519
    %v521 = vpop.xlane.xlu0 %520
    %v522 = vsel %vm485, %v320, -inf
    %523 = vmax.xlane.f32.xlu0 %v522
    %v524 = vpop.xlane.xlu0 %523
    %v525 = vsel %vm485, %v321, -inf
    %526 = vmax.xlane.f32.xlu0 %v525
    %v527 = vpop.xlane.xlu0 %526
    %v528 = vsel %vm485, %v322, -inf
    %529 = vmax.xlane.f32.xlu0 %v528
    %v530 = vpop.xlane.xlu0 %529
    %v531 = vsel %vm485, %v323, -inf
    %532 = vmax.xlane.f32.xlu0 %v531
    %v533 = vpop.xlane.xlu0 %532
    %v534 = vsel %vm485, %v324, -inf
    %535 = vmax.xlane.f32.xlu0 %v534
    %v536 = vpop.xlane.xlu0 %535
    %v537 = vsel %vm485, %v325, -inf
    %538 = vmax.xlane.f32.xlu0 %v537
    %v539 = vpop.xlane.xlu0 %538
    %v540 = vsel %vm485, %v326, -inf
    %541 = vmax.xlane.f32.xlu0 %v540
    %v542 = vpop.xlane.xlu0 %541
    %v543 = vsel %vm485, %v327, -inf
    %544 = vmax.xlane.f32.xlu0 %v543
    %v545 = vpop.xlane.xlu0 %544
    %v546 = vsel %vm485, %v328, -inf
    %547 = vmax.xlane.f32.xlu0 %v546
    %v548 = vpop.xlane.xlu0 %547
    %v549 = vsel %vm485, %v329, -inf
    %550 = vmax.xlane.f32.xlu0 %v549
    %v551 = vpop.xlane.xlu0 %550
    %v552 = vsel %vm485, %v330, -inf
    %553 = vmax.xlane.f32.xlu0 %v552
    %v554 = vpop.xlane.xlu0 %553
    %v555 = vsel %vm485, %v331, -inf
    %556 = vmax.xlane.f32.xlu0 %v555
    %v557 = vpop.xlane.xlu0 %556
    %v558 = vsel %vm485, %v332, -inf
    %559 = vmax.xlane.f32.xlu0 %v558
    %v560 = vpop.xlane.xlu0 %559
    %v561 = vsub.f32 %v308, %v488
    %v562 = vsub.f32 %v309, %v491
    %v563 = vsub.f32 %v310, %v494
    %v564 = vsub.f32 %v311, %v497
    %v565 = vsub.f32 %v312, %v500
    %v566 = vsub.f32 %v313, %v503
    %v567 = vsub.f32 %v314, %v506
    %v568 = vsub.f32 %v315, %v509
    %v569 = vsub.f32 %v316, %v512
    %v570 = vsub.f32 %v317, %v515
    %v571 = vsub.f32 %v318, %v518
    %v572 = vsub.f32 %v319, %v521
    %v573 = vsub.f32 %v320, %v524
    %v574 = vsub.f32 %v321, %v527
    %v575 = vsub.f32 %v322, %v530
    %v576 = vsub.f32 %v323, %v533
    %v577 = vsub.f32 %v324, %v536
    %v578 = vsub.f32 %v325, %v539
    %v579 = vsub.f32 %v326, %v542
    %v580 = vsub.f32 %v327, %v545
    %v581 = vsub.f32 %v328, %v548
    %v582 = vsub.f32 %v329, %v551
    %v583 = vsub.f32 %v330, %v554
    %v584 = vsub.f32 %v331, %v557
    %v585 = vsub.f32 %v332, %v560
    %v586 = vmul.f32 %v561, 1.442695
    %v587 = vpow.pop %v586
    %v588 = vmul.f32 %v562, 1.442695
    %v589 = vpow.pop %v588
    %v590 = vmul.f32 %v563, 1.442695
    %v591 = vpow.pop %v590
    %v592 = vmul.f32 %v564, 1.442695
    %v593 = vpow.pop %v592
    %v594 = vmul.f32 %v565, 1.442695
    %v595 = vpow.pop %v594
    %v596 = vmul.f32 %v566, 1.442695
    %v597 = vpow.pop %v596
    %v598 = vmul.f32 %v567, 1.442695
    %v599 = vpow.pop %v598
    %v600 = vmul.f32 %v568, 1.442695
    %v601 = vpow.pop %v600
    %v602 = vmul.f32 %v569, 1.442695
    %v603 = vpow.pop %v602
    %v604 = vmul.f32 %v570, 1.442695
    %v605 = vpow.pop %v604
    %v606 = vmul.f32 %v571, 1.442695
    %v607 = vpow.pop %v606
    %v608 = vmul.f32 %v572, 1.442695
    %v609 = vpow.pop %v608
    %v610 = vmul.f32 %v573, 1.442695
    %v611 = vpow.pop %v610
    %v612 = vmul.f32 %v574, 1.442695
    %v613 = vpow.pop %v612
    %v614 = vmul.f32 %v575, 1.442695
    %v615 = vpow.pop %v614
    %v616 = vmul.f32 %v576, 1.442695
    %v617 = vpow.pop %v616
    %v618 = vmul.f32 %v577, 1.442695
    %v619 = vpow.pop %v618
    %v620 = vmul.f32 %v578, 1.442695
    %v621 = vpow.pop %v620
    %v622 = vmul.f32 %v579, 1.442695
    %v623 = vpow.pop %v622
    %v624 = vmul.f32 %v580, 1.442695
    %v625 = vpow.pop %v624
    %v626 = vmul.f32 %v581, 1.442695
    %v627 = vpow.pop %v626
    %v628 = vmul.f32 %v582, 1.442695
    %v629 = vpow.pop %v628
    %v630 = vmul.f32 %v583, 1.442695
    %v631 = vpow.pop %v630
    %v632 = vmul.f32 %v584, 1.442695
    %v633 = vpow.pop %v632
    %v634 = vmul.f32 %v585, 1.442695
    %v635 = vpow.pop %v634
    %v636 = vsel %vm485, %v587, 0.0
    %637 = vadd.xlane.f32.xlu0 %v636
    %v638 = vpop.xlane.xlu0 %637
    %v639 = vsel %vm485, %v589, 0.0
    %640 = vadd.xlane.f32.xlu0 %v639
    %v641 = vpop.xlane.xlu0 %640
    %v642 = vsel %vm485, %v591, 0.0
    %643 = vadd.xlane.f32.xlu0 %v642
    %v644 = vpop.xlane.xlu0 %643
    %v645 = vsel %vm485, %v593, 0.0
    %646 = vadd.xlane.f32.xlu0 %v645
    %v647 = vpop.xlane.xlu0 %646
    %v648 = vsel %vm485, %v595, 0.0
    %649 = vadd.xlane.f32.xlu0 %v648
    %v650 = vpop.xlane.xlu0 %649
    %v651 = vsel %vm485, %v597, 0.0
    %652 = vadd.xlane.f32.xlu0 %v651
    %v653 = vpop.xlane.xlu0 %652
    %v654 = vsel %vm485, %v599, 0.0
    %655 = vadd.xlane.f32.xlu0 %v654
    %v656 = vpop.xlane.xlu0 %655
    %v657 = vsel %vm485, %v601, 0.0
    %658 = vadd.xlane.f32.xlu0 %v657
    %v659 = vpop.xlane.xlu0 %658
    %v660 = vsel %vm485, %v603, 0.0
    %661 = vadd.xlane.f32.xlu0 %v660
    %v662 = vpop.xlane.xlu0 %661
    %v663 = vsel %vm485, %v605, 0.0
    %664 = vadd.xlane.f32.xlu0 %v663
    %v665 = vpop.xlane.xlu0 %664
    %v666 = vsel %vm485, %v607, 0.0
    %667 = vadd.xlane.f32.xlu0 %v666
    %v668 = vpop.xlane.xlu0 %667
    %v669 = vsel %vm485, %v609, 0.0
    %670 = vadd.xlane.f32.xlu0 %v669
    %v671 = vpop.xlane.xlu0 %670
    %v672 = vsel %vm485, %v611, 0.0
    %673 = vadd.xlane.f32.xlu0 %v672
    %v674 = vpop.xlane.xlu0 %673
    %v675 = vsel %vm485, %v613, 0.0
    %676 = vadd.xlane.f32.xlu0 %v675
    %v677 = vpop.xlane.xlu0 %676
    %v678 = vsel %vm485, %v615, 0.0
    %679 = vadd.xlane.f32.xlu0 %v678
    %v680 = vpop.xlane.xlu0 %679
    %v681 = vsel %vm485, %v617, 0.0
    %682 = vadd.xlane.f32.xlu0 %v681
    %v683 = vpop.xlane.xlu0 %682
    %v684 = vsel %vm485, %v619, 0.0
    %685 = vadd.xlane.f32.xlu0 %v684
    %v686 = vpop.xlane.xlu0 %685
    %v687 = vsel %vm485, %v621, 0.0
    %688 = vadd.xlane.f32.xlu0 %v687
    %v689 = vpop.xlane.xlu0 %688
    %v690 = vsel %vm485, %v623, 0.0
    %691 = vadd.xlane.f32.xlu0 %v690
    %v692 = vpop.xlane.xlu0 %691
    %v693 = vsel %vm485, %v625, 0.0
    %694 = vadd.xlane.f32.xlu0 %v693
    %v695 = vpop.xlane.xlu0 %694
    %v696 = vsel %vm485, %v627, 0.0
    %697 = vadd.xlane.f32.xlu0 %v696
    %v698 = vpop.xlane.xlu0 %697
    %v699 = vsel %vm485, %v629, 0.0
    %700 = vadd.xlane.f32.xlu0 %v699
    %v701 = vpop.xlane.xlu0 %700
    %v702 = vsel %vm485, %v631, 0.0
    %703 = vadd.xlane.f32.xlu0 %v702
    %v704 = vpop.xlane.xlu0 %703
    %v705 = vsel %vm485, %v633, 0.0
    %706 = vadd.xlane.f32.xlu0 %v705
    %v707 = vpop.xlane.xlu0 %706
    %v708 = vsel %vm485, %v635, 0.0
    %709 = vadd.xlane.f32.xlu0 %v708
    %v710 = vpop.xlane.xlu0 %709
    %v711 = vlog2.pop %v638
    %v712 = vmul.f32 %v711, 0.6931472
    %v713 = vlog2.pop %v641
    %v714 = vmul.f32 %v713, 0.6931472
    %v715 = vlog2.pop %v644
    %v716 = vmul.f32 %v715, 0.6931472
    %v717 = vlog2.pop %v647
    %v718 = vmul.f32 %v717, 0.6931472
    %v719 = vlog2.pop %v650
    %v720 = vmul.f32 %v719, 0.6931472
    %v721 = vlog2.pop %v653
    %v722 = vmul.f32 %v721, 0.6931472
    %v723 = vlog2.pop %v656
    %v724 = vmul.f32 %v723, 0.6931472
    %v725 = vlog2.pop %v659
    %v726 = vmul.f32 %v725, 0.6931472
    %v727 = vlog2.pop %v662
    %v728 = vmul.f32 %v727, 0.6931472
    %v729 = vlog2.pop %v665
    %v730 = vmul.f32 %v729, 0.6931472
    %v731 = vlog2.pop %v668
    %v732 = vmul.f32 %v731, 0.6931472
    %v733 = vlog2.pop %v671
    %v734 = vmul.f32 %v733, 0.6931472
    %v735 = vlog2.pop %v674
    %v736 = vmul.f32 %v735, 0.6931472
    %v737 = vlog2.pop %v677
    %v738 = vmul.f32 %v737, 0.6931472
    %v739 = vlog2.pop %v680
    %v740 = vmul.f32 %v739, 0.6931472
    %v741 = vlog2.pop %v683
    %v742 = vmul.f32 %v741, 0.6931472
    %v743 = vlog2.pop %v686
    %v744 = vmul.f32 %v743, 0.6931472
    %v745 = vlog2.pop %v689
    %v746 = vmul.f32 %v745, 0.6931472
    %v747 = vlog2.pop %v692
    %v748 = vmul.f32 %v747, 0.6931472
    %v749 = vlog2.pop %v695
    %v750 = vmul.f32 %v749, 0.6931472
    %v751 = vlog2.pop %v698
    %v752 = vmul.f32 %v751, 0.6931472
    %v753 = vlog2.pop %v701
    %v754 = vmul.f32 %v753, 0.6931472
    %v755 = vlog2.pop %v704
    %v756 = vmul.f32 %v755, 0.6931472
    %v757 = vlog2.pop %v707
    %v758 = vmul.f32 %v757, 0.6931472
    %v759 = vlog2.pop %v710
    %v760 = vmul.f32 %v759, 0.6931472
    %v761 = vrcp.pop %v638
    %v762 = vrcp.pop %v641
    %v763 = vrcp.pop %v644
    %v764 = vrcp.pop %v647
    %v765 = vrcp.pop %v650
    %v766 = vrcp.pop %v653
    %v767 = vrcp.pop %v656
    %v768 = vrcp.pop %v659
    %v769 = vrcp.pop %v662
    %v770 = vrcp.pop %v665
    %v771 = vrcp.pop %v668
    %v772 = vrcp.pop %v671
    %v773 = vrcp.pop %v674
    %v774 = vrcp.pop %v677
    %v775 = vrcp.pop %v680
    %v776 = vrcp.pop %v683
    %v777 = vrcp.pop %v686
    %v778 = vrcp.pop %v689
    %v779 = vrcp.pop %v692
    %v780 = vrcp.pop %v695
    %v781 = vrcp.pop %v698
    %v782 = vrcp.pop %v701
    %v783 = vrcp.pop %v704
    %v784 = vrcp.pop %v707
    %v785 = vrcp.pop %v710
    %v786 = vmul.f32 %v587, %v761
    %v787 = vmul.f32 %v589, %v762
    %v788 = vmul.f32 %v591, %v763
    %v789 = vmul.f32 %v593, %v764
    %v790 = vmul.f32 %v595, %v765
    %v791 = vmul.f32 %v597, %v766
    %v792 = vmul.f32 %v599, %v767
    %v793 = vmul.f32 %v601, %v768
    %v794 = vmul.f32 %v603, %v769
    %v795 = vmul.f32 %v605, %v770
    %v796 = vmul.f32 %v607, %v771
    %v797 = vmul.f32 %v609, %v772
    %v798 = vmul.f32 %v611, %v773
    %v799 = vmul.f32 %v613, %v774
    %v800 = vmul.f32 %v615, %v775
    %v801 = vmul.f32 %v617, %v776
    %v802 = vmul.f32 %v619, %v777
    %v803 = vmul.f32 %v621, %v778
    %v804 = vmul.f32 %v623, %v779
    %v805 = vmul.f32 %v625, %v780
    %v806 = vmul.f32 %v627, %v781
    %v807 = vmul.f32 %v629, %v782
    %v808 = vmul.f32 %v631, %v783
    %v809 = vmul.f32 %v633, %v784
    %v810 = vmul.f32 %v635, %v785
    %v812 = vsel %vm485, %v460, 0
    %v815 = vsel %vm485, %v461, 0
    %v818 = vsel %vm485, %v462, 0
    %v821 = vsel %vm485, %v463, 0
    %v824 = vsel %vm485, %v464, 0
    %v827 = vsel %vm485, %v465, 0
    %v830 = vsel %vm485, %v466, 0
    %v833 = vsel %vm485, %v467, 0
    %v836 = vsel %vm485, %v468, 0
    %v839 = vsel %vm485, %v469, 0
    %v842 = vsel %vm485, %v470, 0
    %v845 = vsel %vm485, %v471, 0
    %v848 = vsel %vm485, %v472, 0
    %v851 = vsel %vm485, %v473, 0
    %v854 = vsel %vm485, %v474, 0
    %v857 = vsel %vm485, %v475, 0
    %v860 = vsel %vm485, %v476, 0
    %v863 = vsel %vm485, %v477, 0
    %v866 = vsel %vm485, %v478, 0
    %v869 = vsel %vm485, %v479, 0
    %v872 = vsel %vm485, %v480, 0
    %v875 = vsel %vm485, %v481, 0
    %v878 = vsel %vm485, %v482, 0
    %v881 = vsel %vm485, %v483, 0
    %v884 = vsel %vm485, %v484, 0
    %vm886 = vcmask 1041408
    %v888 = vsel %vm886, %v178, 0
    %890 = vmatprep.subr.mxu0 0.0
    %891 = vmatpush1.msra.mxu0 %v177
    %892 = vmatprep.subr.mxu0 0.0
    %893 = vmatpush1.msra.mxu0 %v888
    %894 = vmatprep.subr.mxu0 0.0
    %895 = vmatpush1.msra.mxu0 0.0
    %896 = vmatprep.subr.mxu0 0.0
    %897 = vmatpush1.msra.mxu0 0.0
    %898 = vmatprep.subr.mxu0 0.0
    %899 = vmatpush1.msra.mxu0 0.0
    %900 = vmatprep.subr.mxu0 0.0
    %901 = vmatpush1.msra.mxu0 0.0
    %902 = vmatprep.subr.mxu0 0.0
    %903 = vmatpush1.msra.mxu0 0.0
    %904 = vmatprep.subr.mxu0 0.0
    %905 = vmatpush1.msra.mxu0 0.0
    %906 = vmatprep.subr.mxu0 0.0
    %907 = vmatpush1.msra.mxu0 0.0
    %908 = vmatprep.subr.mxu0 0.0
    %909 = vmatpush1.msra.mxu0 0.0
    %910 = vmatprep.subr.mxu0 0.0
    %911 = vmatpush1.msra.mxu0 0.0
    %912 = vmatprep.subr.mxu0 0.0
    %913 = vmatpush1.msra.mxu0 0.0
    %914 = vmatprep.subr.mxu0 0.0
    %915 = vmatpush1.msra.mxu0 0.0
    %916 = vmatprep.subr.mxu0 0.0
    %917 = vmatpush1.msra.mxu0 0.0
    %918 = vmatprep.subr.mxu0 0.0
    %919 = vmatpush1.msra.mxu0 0.0
    %920 = vmatprep.subr.mxu0 0.0
    %921 = vmatpush1.msra.mxu0 0.0
    %922 = vmatprep.subr.mxu0 0.0
    %923 = vmatpush1.msra.mxu0 0.0
    %924 = vmatprep.subr.mxu0 0.0
    %925 = vmatpush1.msra.mxu0 0.0
    %926 = vmatprep.subr.mxu0 0.0
    %927 = vmatpush1.msra.mxu0 0.0
    %928 = vmatprep.subr.mxu0 0.0
    %929 = vmatpush1.msra.mxu0 0.0
    %930 = vmatprep.subr.mxu0 0.0
    %931 = vmatpush1.msra.mxu0 0.0
    %932 = vmatprep.subr.mxu0 0.0
    %933 = vmatpush1.msra.mxu0 0.0
    %934 = vmatprep.subr.mxu0 0.0
    %935 = vmatpush1.msra.mxu0 0.0
    %936 = vmatprep.subr.mxu0 0.0
    %937 = vmatpush1.msra.mxu0 0.0
    %938 = vmatprep.subr.mxu0 0.0
    %939 = vmatpush1.msra.mxu0 0.0
    %940 = vmatprep.subr.mxu0 0.0
    %941 = vmatpush1.msra.mxu0 0.0
    %942 = vmatprep.subr.mxu0 0.0
    %943 = vmatpush1.msra.mxu0 0.0
    %944 = vmatprep.subr.mxu0 0.0
    %945 = vmatpush1.msra.mxu0 0.0
    %946 = vmatprep.subr.mxu0 0.0
    %947 = vmatpush1.msra.mxu0 0.0
    %948 = vmatprep.subr.mxu0 0.0
    %949 = vmatpush1.msra.mxu0 0.0
    %950 = vmatprep.subr.mxu0 0.0
    %951 = vmatpush1.msra.mxu0 0.0
    %952 = vmatprep.subr.mxu0 0.0
    %953 = vmatpush1.msra.mxu0 0.0
    %954 = vmatprep.mubr.f32.mxu0 0.0
    %955 = vmatmul.mubr.f32.gmra.mrb[0].mxu0 %v812
    %v956 = vpop.f32.mrb[0].mxu0
    %v957 = vadd.f32 0.0, %v956
    %v958 = vpop.f32.mrb[0].mxu0
    %959 = vmatprep.mubr.f32.mxu0 0.0
    %960 = vmatmul.mubr.f32.gmra.mrb[0].mxu0 %v815
    %v961 = vpop.f32.mrb[0].mxu0
    %v962 = vadd.f32 0.0, %v961
    %v963 = vpop.f32.mrb[0].mxu0
    %964 = vmatprep.mubr.f32.mxu0 0.0
    %965 = vmatmul.mubr.f32.gmra.mrb[0].mxu0 %v818
    %v966 = vpop.f32.mrb[0].mxu0
    %v967 = vadd.f32 0.0, %v966
    %v968 = vpop.f32.mrb[0].mxu0
    %969 = vmatprep.mubr.f32.mxu0 0.0
    %970 = vmatmul.mubr.f32.gmra.mrb[0].mxu0 %v821
    %v971 = vpop.f32.mrb[0].mxu0
    %v972 = vadd.f32 0.0, %v971
    %v973 = vpop.f32.mrb[0].mxu0
    %974 = vmatprep.mubr.f32.mxu0 0.0
    %975 = vmatmul.mubr.f32.gmra.mrb[0].mxu0 %v824
    %v976 = vpop.f32.mrb[0].mxu0
    %v977 = vadd.f32 0.0, %v976
    %v978 = vpop.f32.mrb[0].mxu0
    %979 = vmatprep.mubr.f32.mxu0 0.0
    %980 = vmatmul.mubr.f32.gmra.mrb[0].mxu0 %v827
    %v981 = vpop.f32.mrb[0].mxu0
    %v982 = vadd.f32 0.0, %v981
    %v983 = vpop.f32.mrb[0].mxu0
    %984 = vmatprep.mubr.f32.mxu0 0.0
    %985 = vmatmul.mubr.f32.gmra.mrb[0].mxu0 %v830
    %v986 = vpop.f32.mrb[0].mxu0
    %v987 = vadd.f32 0.0, %v986
    %v988 = vpop.f32.mrb[0].mxu0
    %989 = vmatprep.mubr.f32.mxu0 0.0
    %990 = vmatmul.mubr.f32.gmra.mrb[0].mxu0 %v833
    %v991 = vpop.f32.mrb[0].mxu0
    %v992 = vadd.f32 0.0, %v991
    %v993 = vpop.f32.mrb[0].mxu0
    %994 = vmatprep.mubr.f32.mxu0 0.0
    %995 = vmatmul.mubr.f32.gmra.mrb[0].mxu0 %v836
    %v996 = vpop.f32.mrb[0].mxu0
    %v997 = vadd.f32 0.0, %v996
    %v998 = vpop.f32.mrb[0].mxu0
    %999 = vmatprep.mubr.f32.mxu0 0.0
    %1000 = vmatmul.mubr.f32.gmra.mrb[0].mxu0 %v839
    %v1001 = vpop.f32.mrb[0].mxu0
    %v1002 = vadd.f32 0.0, %v1001
    %v1003 = vpop.f32.mrb[0].mxu0
    %1004 = vmatprep.mubr.f32.mxu0 0.0
    %1005 = vmatmul.mubr.f32.gmra.mrb[0].mxu0 %v842
    %v1006 = vpop.f32.mrb[0].mxu0
    %v1007 = vadd.f32 0.0, %v1006
    %v1008 = vpop.f32.mrb[0].mxu0
    %1009 = vmatprep.mubr.f32.mxu0 0.0
    %1010 = vmatmul.mubr.f32.gmra.mrb[0].mxu0 %v845
    %v1011 = vpop.f32.mrb[0].mxu0
    %v1012 = vadd.f32 0.0, %v1011
    %v1013 = vpop.f32.mrb[0].mxu0
    %1014 = vmatprep.mubr.f32.mxu0 0.0
    %1015 = vmatmul.mubr.f32.gmra.mrb[0].mxu0 %v848
    %v1016 = vpop.f32.mrb[0].mxu0
    %v1017 = vadd.f32 0.0, %v1016
    %v1018 = vpop.f32.mrb[0].mxu0
    %1019 = vmatprep.mubr.f32.mxu0 0.0
    %1020 = vmatmul.mubr.f32.gmra.mrb[0].mxu0 %v851
    %v1021 = vpop.f32.mrb[0].mxu0
    %v1022 = vadd.f32 0.0, %v1021
    %v1023 = vpop.f32.mrb[0].mxu0
    %1024 = vmatprep.mubr.f32.mxu0 0.0
    %1025 = vmatmul.mubr.f32.gmra.mrb[0].mxu0 %v854
    %v1026 = vpop.f32.mrb[0].mxu0
    %v1027 = vadd.f32 0.0, %v1026
    %v1028 = vpop.f32.mrb[0].mxu0
    %1029 = vmatprep.mubr.f32.mxu0 0.0
    %1030 = vmatmul.mubr.f32.gmra.mrb[0].mxu0 %v857
    %v1031 = vpop.f32.mrb[0].mxu0
    %v1032 = vadd.f32 0.0, %v1031
    %v1033 = vpop.f32.mrb[0].mxu0
    %1034 = vmatprep.mubr.f32.mxu0 0.0
    %1035 = vmatmul.mubr.f32.gmra.mrb[0].mxu0 %v860
    %v1036 = vpop.f32.mrb[0].mxu0
    %v1037 = vadd.f32 0.0, %v1036
    %v1038 = vpop.f32.mrb[0].mxu0
    %1039 = vmatprep.mubr.f32.mxu0 0.0
    %1040 = vmatmul.mubr.f32.gmra.mrb[0].mxu0 %v863
    %v1041 = vpop.f32.mrb[0].mxu0
    %v1042 = vadd.f32 0.0, %v1041
    %v1043 = vpop.f32.mrb[0].mxu0
    %1044 = vmatprep.mubr.f32.mxu0 0.0
    %1045 = vmatmul.mubr.f32.gmra.mrb[0].mxu0 %v866
    %v1046 = vpop.f32.mrb[0].mxu0
    %v1047 = vadd.f32 0.0, %v1046
    %v1048 = vpop.f32.mrb[0].mxu0
    %1049 = vmatprep.mubr.f32.mxu0 0.0
    %1050 = vmatmul.mubr.f32.gmra.mrb[0].mxu0 %v869
    %v1051 = vpop.f32.mrb[0].mxu0
    %v1052 = vadd.f32 0.0, %v1051
    %v1053 = vpop.f32.mrb[0].mxu0
    %1054 = vmatprep.mubr.f32.mxu0 0.0
    %1055 = vmatmul.mubr.f32.gmra.mrb[0].mxu0 %v872
    %v1056 = vpop.f32.mrb[0].mxu0
    %v1057 = vadd.f32 0.0, %v1056
    %v1058 = vpop.f32.mrb[0].mxu0
    %1059 = vmatprep.mubr.f32.mxu0 0.0
    %1060 = vmatmul.mubr.f32.gmra.mrb[0].mxu0 %v875
    %v1061 = vpop.f32.mrb[0].mxu0
    %v1062 = vadd.f32 0.0, %v1061
    %v1063 = vpop.f32.mrb[0].mxu0
    %1064 = vmatprep.mubr.f32.mxu0 0.0
    %1065 = vmatmul.mubr.f32.gmra.mrb[0].mxu0 %v878
    %v1066 = vpop.f32.mrb[0].mxu0
    %v1067 = vadd.f32 0.0, %v1066
    %v1068 = vpop.f32.mrb[0].mxu0
    %1069 = vmatprep.mubr.f32.mxu0 0.0
    %1070 = vmatmul.mubr.f32.gmra.mrb[0].mxu0 %v881
    %v1071 = vpop.f32.mrb[0].mxu0
    %v1072 = vadd.f32 0.0, %v1071
    %v1073 = vpop.f32.mrb[0].mxu0
    %1074 = vmatprep.mubr.f32.mxu0 0.0
    %1075 = vmatmul.mubr.f32.gmra.mrb[0].mxu0 %v884
    %v1076 = vpop.f32.mrb[0].mxu0
    %v1077 = vadd.f32 0.0, %v1076
    %v1078 = vpop.f32.mrb[0].mxu0
    %1079 = vdwg.mxu0
    %v1080 = vsub.f32 %v712, %v561
    %v1081 = vsub.f32 %v714, %v562
    %v1082 = vsub.f32 %v716, %v563
    %v1083 = vsub.f32 %v718, %v564
    %v1084 = vsub.f32 %v720, %v565
    %v1085 = vsub.f32 %v722, %v566
    %v1086 = vsub.f32 %v724, %v567
    %v1087 = vsub.f32 %v726, %v568
    %v1088 = vsub.f32 %v728, %v569
    %v1089 = vsub.f32 %v730, %v570
    %v1090 = vsub.f32 %v732, %v571
    %v1091 = vsub.f32 %v734, %v572
    %v1092 = vsub.f32 %v736, %v573
    %v1093 = vsub.f32 %v738, %v574
    %v1094 = vsub.f32 %v740, %v575
    %v1095 = vsub.f32 %v742, %v576
    %v1096 = vsub.f32 %v744, %v577
    %v1097 = vsub.f32 %v746, %v578
    %v1098 = vsub.f32 %v748, %v579
    %v1099 = vsub.f32 %v750, %v580
    %v1100 = vsub.f32 %v752, %v581
    %v1101 = vsub.f32 %v754, %v582
    %v1102 = vsub.f32 %v756, %v583
    %v1103 = vsub.f32 %v758, %v584
    %v1104 = vsub.f32 %v760, %v585
    %v1105 = vmul.f32 %v957, %v1080
    %v1106 = vmul.f32 %v962, %v1081
    %v1107 = vmul.f32 %v967, %v1082
    %v1108 = vmul.f32 %v972, %v1083
    %v1109 = vmul.f32 %v977, %v1084
    %v1110 = vmul.f32 %v982, %v1085
    %v1111 = vmul.f32 %v987, %v1086
    %v1112 = vmul.f32 %v992, %v1087
    %v1113 = vmul.f32 %v997, %v1088
    %v1114 = vmul.f32 %v1002, %v1089
    %v1115 = vmul.f32 %v1007, %v1090
    %v1116 = vmul.f32 %v1012, %v1091
    %v1117 = vmul.f32 %v1017, %v1092
    %v1118 = vmul.f32 %v1022, %v1093
    %v1119 = vmul.f32 %v1027, %v1094
    %v1120 = vmul.f32 %v1032, %v1095
    %v1121 = vmul.f32 %v1037, %v1096
    %v1122 = vmul.f32 %v1042, %v1097
    %v1123 = vmul.f32 %v1047, %v1098
    %v1124 = vmul.f32 %v1052, %v1099
    %v1125 = vmul.f32 %v1057, %v1100
    %v1126 = vmul.f32 %v1062, %v1101
    %v1127 = vmul.f32 %v1067, %v1102
    %v1128 = vmul.f32 %v1072, %v1103
    %v1129 = vmul.f32 %v1077, %v1104
    %v1130 = vsel %vm283, %v1105, 0.0
    %v1131 = vsel %vm284, %v1106, 0.0
    %v1132 = vsel %vm285, %v1107, 0.0
    %v1133 = vsel %vm286, %v1108, 0.0
    %v1134 = vsel %vm287, %v1109, 0.0
    %v1135 = vsel %vm288, %v1110, 0.0
    %v1136 = vsel %vm289, %v1111, 0.0
    %v1137 = vsel %vm290, %v1112, 0.0
    %v1138 = vsel %vm291, %v1113, 0.0
    %v1139 = vsel %vm292, %v1114, 0.0
    %v1140 = vsel %vm293, %v1115, 0.0
    %v1141 = vsel %vm294, %v1116, 0.0
    %v1142 = vsel %vm295, %v1117, 0.0
    %v1143 = vsel %vm296, %v1118, 0.0
    %v1144 = vsel %vm297, %v1119, 0.0
    %v1145 = vsel %vm298, %v1120, 0.0
    %v1146 = vsel %vm299, %v1121, 0.0
    %v1147 = vsel %vm300, %v1122, 0.0
    %v1148 = vsel %vm301, %v1123, 0.0
    %v1149 = vsel %vm302, %v1124, 0.0
    %v1150 = vsel %vm303, %v1125, 0.0
    %v1151 = vsel %vm304, %v1126, 0.0
    %v1152 = vsel %vm305, %v1127, 0.0
    %v1153 = vsel %vm306, %v1128, 0.0
    %v1154 = vsel %vm307, %v1129, 0.0
    %v1155 = vld [vmem:[%s4] sm:$0x1]
    %v1156 = vsel %vm485, %v1130, 0.0
    %v1157 = vsel %vm485, %v1131, 0.0
    %v1158 = vadd.f32 %v1156, %v1157
    %v1159 = vsel %vm485, %v1132, 0.0
    %v1160 = vadd.f32 %v1158, %v1159
    %v1161 = vsel %vm485, %v1133, 0.0
    %v1162 = vadd.f32 %v1160, %v1161
    %v1163 = vsel %vm485, %v1134, 0.0
    %v1164 = vadd.f32 %v1162, %v1163
    %v1165 = vsel %vm485, %v1135, 0.0
    %v1166 = vadd.f32 %v1164, %v1165
    %v1167 = vsel %vm485, %v1136, 0.0
    %v1168 = vadd.f32 %v1166, %v1167
    %v1169 = vsel %vm485, %v1137, 0.0
    %v1170 = vadd.f32 %v1168, %v1169
    %v1171 = vsel %vm485, %v1138, 0.0
    %v1172 = vadd.f32 %v1170, %v1171
    %v1173 = vsel %vm485, %v1139, 0.0
    %v1174 = vadd.f32 %v1172, %v1173
    %v1175 = vsel %vm485, %v1140, 0.0
    %v1176 = vadd.f32 %v1174, %v1175
    %v1177 = vsel %vm485, %v1141, 0.0
    %v1178 = vadd.f32 %v1176, %v1177
    %v1179 = vsel %vm485, %v1142, 0.0
    %v1180 = vadd.f32 %v1178, %v1179
    %v1181 = vsel %vm485, %v1143, 0.0
    %v1182 = vadd.f32 %v1180, %v1181
    %v1183 = vsel %vm485, %v1144, 0.0
    %v1184 = vadd.f32 %v1182, %v1183
    %v1185 = vsel %vm485, %v1145, 0.0
    %v1186 = vadd.f32 %v1184, %v1185
    %v1187 = vsel %vm485, %v1146, 0.0
    %v1188 = vadd.f32 %v1186, %v1187
    %v1189 = vsel %vm485, %v1147, 0.0
    %v1190 = vadd.f32 %v1188, %v1189
    %v1191 = vsel %vm485, %v1148, 0.0
    %v1192 = vadd.f32 %v1190, %v1191
    %v1193 = vsel %vm485, %v1149, 0.0
    %v1194 = vadd.f32 %v1192, %v1193
    %v1195 = vsel %vm485, %v1150, 0.0
    %v1196 = vadd.f32 %v1194, %v1195
    %v1197 = vsel %vm485, %v1151, 0.0
    %v1198 = vadd.f32 %v1196, %v1197
    %v1199 = vsel %vm485, %v1152, 0.0
    %v1200 = vadd.f32 %v1198, %v1199
    %v1201 = vsel %vm485, %v1153, 0.0
    %v1202 = vadd.f32 %v1200, %v1201
    %v1203 = vsel %vm485, %v1154, 0.0
    %v1204 = vadd.f32 %v1202, %v1203
    %v1205 = vrot.slane %v1204, 4
    %v1206 = vadd.f32 %v1204, %v1205
    %v1207 = vrot.slane %v1206, 2
    %v1208 = vadd.f32 %v1206, %v1207
    %v1209 = vrot.slane %v1208, 1
    %v1210 = vadd.f32 %v1208, %v1209
    %v1211 = vadd.f32 %v1155, %v1210
    %vm1212 = vcmask 73728
    %1213 = vst.msk [vmem:[%s4] sm:$0x1] %vm1212, %v1211
    %vm1214 = vcmp.ge.f32.partialorder %v308, %v488
    %vm1215 = vcmp.ge.f32.partialorder %v309, %v491
    %vm1216 = vcmp.ge.f32.partialorder %v310, %v494
    %vm1217 = vcmp.ge.f32.partialorder %v311, %v497
    %vm1218 = vcmp.ge.f32.partialorder %v312, %v500
    %vm1219 = vcmp.ge.f32.partialorder %v313, %v503
    %vm1220 = vcmp.ge.f32.partialorder %v314, %v506
    %vm1221 = vcmp.ge.f32.partialorder %v315, %v509
    %vm1222 = vcmp.ge.f32.partialorder %v316, %v512
    %vm1223 = vcmp.ge.f32.partialorder %v317, %v515
    %vm1224 = vcmp.ge.f32.partialorder %v318, %v518
    %vm1225 = vcmp.ge.f32.partialorder %v319, %v521
    %vm1226 = vcmp.ge.f32.partialorder %v320, %v524
    %vm1227 = vcmp.ge.f32.partialorder %v321, %v527
    %vm1228 = vcmp.ge.f32.partialorder %v322, %v530
    %vm1229 = vcmp.ge.f32.partialorder %v323, %v533
    %vm1230 = vcmp.ge.f32.partialorder %v324, %v536
    %vm1231 = vcmp.ge.f32.partialorder %v325, %v539
    %vm1232 = vcmp.ge.f32.partialorder %v326, %v542
    %vm1233 = vcmp.ge.f32.partialorder %v327, %v545
    %vm1234 = vcmp.ge.f32.partialorder %v328, %v548
    %vm1235 = vcmp.ge.f32.partialorder %v329, %v551
    %vm1236 = vcmp.ge.f32.partialorder %v330, %v554
    %vm1237 = vcmp.ge.f32.partialorder %v331, %v557
    %vm1238 = vcmp.ge.f32.partialorder %v332, %v560
    %v1239 = vsel %vm1214, %v334, 10
    %v1240 = vsel %vm1215, %v334, 10
    %v1241 = vsel %vm1216, %v334, 10
    %v1242 = vsel %vm1217, %v334, 10
    %v1243 = vsel %vm1218, %v334, 10
    %v1244 = vsel %vm1219, %v334, 10
    %v1245 = vsel %vm1220, %v334, 10
    %v1246 = vsel %vm1221, %v334, 10
    %v1247 = vsel %vm1222, %v334, 10
    %v1248 = vsel %vm1223, %v334, 10
    %v1249 = vsel %vm1224, %v334, 10
    %v1250 = vsel %vm1225, %v334, 10
    %v1251 = vsel %vm1226, %v334, 10
    %v1252 = vsel %vm1227, %v334, 10
    %v1253 = vsel %vm1228, %v334, 10
    %v1254 = vsel %vm1229, %v334, 10
    %v1255 = vsel %vm1230, %v334, 10
    %v1256 = vsel %vm1231, %v334, 10
    %v1257 = vsel %vm1232, %v334, 10
    %v1258 = vsel %vm1233, %v334, 10
    %v1259 = vsel %vm1234, %v334, 10
    %v1260 = vsel %vm1235, %v334, 10
    %v1261 = vsel %vm1236, %v334, 10
    %v1262 = vsel %vm1237, %v334, 10
    %v1263 = vsel %vm1238, %v334, 10
    %v1264 = vsel %vm485, %v1239, 2147483647
    %v1265 = vand.u32 %v1264, 65535
    %v1266 = vshra.s32 %v1264, 16
    %v1267 = vcvt.s32.f32 %v1265
    %v1268 = vcvt.s32.f32 %v1266
    %1269 = vmin.xlane.f32.xlu0 %v1268
    %v1270 = vpop.xlane.xlu0 %1269
    %vm1271 = vcmp.eq.f32.partialorder %v1268, %v1270
    %v1272 = vsel %vm1271, %v1267, inf
    %1273 = vmin.xlane.f32.xlu0 %v1272
    %v1274 = vpop.xlane.xlu0 %1273
    %v1275 = vcvt.f32.s32 %v1274
    %v1276 = vcvt.f32.s32 %v1270
    %v1277 = vshll.u32 %v1276, 16
    %v1278 = vadd.s32 %v1277, %v1275
    %v1279 = vsel %vm485, %v1240, 2147483647
    %v1280 = vand.u32 %v1279, 65535
    %v1281 = vshra.s32 %v1279, 16
    %v1282 = vcvt.s32.f32 %v1280
    %v1283 = vcvt.s32.f32 %v1281
    %1284 = vmin.xlane.f32.xlu0 %v1283
    %v1285 = vpop.xlane.xlu0 %1284
    %vm1286 = vcmp.eq.f32.partialorder %v1283, %v1285
    %v1287 = vsel %vm1286, %v1282, inf
    %1288 = vmin.xlane.f32.xlu0 %v1287
    %v1289 = vpop.xlane.xlu0 %1288
    %v1290 = vcvt.f32.s32 %v1289
    %v1291 = vcvt.f32.s32 %v1285
    %v1292 = vshll.u32 %v1291, 16
    %v1293 = vadd.s32 %v1292, %v1290
    %v1294 = vsel %vm485, %v1241, 2147483647
    %v1295 = vand.u32 %v1294, 65535
    %v1296 = vshra.s32 %v1294, 16
    %v1297 = vcvt.s32.f32 %v1295
    %v1298 = vcvt.s32.f32 %v1296
    %1299 = vmin.xlane.f32.xlu0 %v1298
    %v1300 = vpop.xlane.xlu0 %1299
    %vm1301 = vcmp.eq.f32.partialorder %v1298, %v1300
    %v1302 = vsel %vm1301, %v1297, inf
    %1303 = vmin.xlane.f32.xlu0 %v1302
    %v1304 = vpop.xlane.xlu0 %1303
    %v1305 = vcvt.f32.s32 %v1304
    %v1306 = vcvt.f32.s32 %v1300
    %v1307 = vshll.u32 %v1306, 16
    %v1308 = vadd.s32 %v1307, %v1305
    %v1309 = vsel %vm485, %v1242, 2147483647
    %v1310 = vand.u32 %v1309, 65535
    %v1311 = vshra.s32 %v1309, 16
    %v1312 = vcvt.s32.f32 %v1310
    %v1313 = vcvt.s32.f32 %v1311
    %1314 = vmin.xlane.f32.xlu0 %v1313
    %v1315 = vpop.xlane.xlu0 %1314
    %vm1316 = vcmp.eq.f32.partialorder %v1313, %v1315
    %v1317 = vsel %vm1316, %v1312, inf
    %1318 = vmin.xlane.f32.xlu0 %v1317
    %v1319 = vpop.xlane.xlu0 %1318
    %v1320 = vcvt.f32.s32 %v1319
    %v1321 = vcvt.f32.s32 %v1315
    %v1322 = vshll.u32 %v1321, 16
    %v1323 = vadd.s32 %v1322, %v1320
    %v1324 = vsel %vm485, %v1243, 2147483647
    %v1325 = vand.u32 %v1324, 65535
    %v1326 = vshra.s32 %v1324, 16
    %v1327 = vcvt.s32.f32 %v1325
    %v1328 = vcvt.s32.f32 %v1326
    %1329 = vmin.xlane.f32.xlu0 %v1328
    %v1330 = vpop.xlane.xlu0 %1329
    %vm1331 = vcmp.eq.f32.partialorder %v1328, %v1330
    %v1332 = vsel %vm1331, %v1327, inf
    %1333 = vmin.xlane.f32.xlu0 %v1332
    %v1334 = vpop.xlane.xlu0 %1333
    %v1335 = vcvt.f32.s32 %v1334
    %v1336 = vcvt.f32.s32 %v1330
    %v1337 = vshll.u32 %v1336, 16
    %v1338 = vadd.s32 %v1337, %v1335
    %v1339 = vsel %vm485, %v1244, 2147483647
    %v1340 = vand.u32 %v1339, 65535
    %v1341 = vshra.s32 %v1339, 16
    %v1342 = vcvt.s32.f32 %v1340
    %v1343 = vcvt.s32.f32 %v1341
    %1344 = vmin.xlane.f32.xlu0 %v1343
    %v1345 = vpop.xlane.xlu0 %1344
    %vm1346 = vcmp.eq.f32.partialorder %v1343, %v1345
    %v1347 = vsel %vm1346, %v1342, inf
    %1348 = vmin.xlane.f32.xlu0 %v1347
    %v1349 = vpop.xlane.xlu0 %1348
    %v1350 = vcvt.f32.s32 %v1349
    %v1351 = vcvt.f32.s32 %v1345
    %v1352 = vshll.u32 %v1351, 16
    %v1353 = vadd.s32 %v1352, %v1350
    %v1354 = vsel %vm485, %v1245, 2147483647
    %v1355 = vand.u32 %v1354, 65535
    %v1356 = vshra.s32 %v1354, 16
    %v1357 = vcvt.s32.f32 %v1355
    %v1358 = vcvt.s32.f32 %v1356
    %1359 = vmin.xlane.f32.xlu0 %v1358
    %v1360 = vpop.xlane.xlu0 %1359
    %vm1361 = vcmp.eq.f32.partialorder %v1358, %v1360
    %v1362 = vsel %vm1361, %v1357, inf
    %1363 = vmin.xlane.f32.xlu0 %v1362
    %v1364 = vpop.xlane.xlu0 %1363
    %v1365 = vcvt.f32.s32 %v1364
    %v1366 = vcvt.f32.s32 %v1360
    %v1367 = vshll.u32 %v1366, 16
    %v1368 = vadd.s32 %v1367, %v1365
    %v1369 = vsel %vm485, %v1246, 2147483647
    %v1370 = vand.u32 %v1369, 65535
    %v1371 = vshra.s32 %v1369, 16
    %v1372 = vcvt.s32.f32 %v1370
    %v1373 = vcvt.s32.f32 %v1371
    %1374 = vmin.xlane.f32.xlu0 %v1373
    %v1375 = vpop.xlane.xlu0 %1374
    %vm1376 = vcmp.eq.f32.partialorder %v1373, %v1375
    %v1377 = vsel %vm1376, %v1372, inf
    %1378 = vmin.xlane.f32.xlu0 %v1377
    %v1379 = vpop.xlane.xlu0 %1378
    %v1380 = vcvt.f32.s32 %v1379
    %v1381 = vcvt.f32.s32 %v1375
    %v1382 = vshll.u32 %v1381, 16
    %v1383 = vadd.s32 %v1382, %v1380
    %v1384 = vsel %vm485, %v1247, 2147483647
    %v1385 = vand.u32 %v1384, 65535
    %v1386 = vshra.s32 %v1384, 16
    %v1387 = vcvt.s32.f32 %v1385
    %v1388 = vcvt.s32.f32 %v1386
    %1389 = vmin.xlane.f32.xlu0 %v1388
    %v1390 = vpop.xlane.xlu0 %1389
    %vm1391 = vcmp.eq.f32.partialorder %v1388, %v1390
    %v1392 = vsel %vm1391, %v1387, inf
    %1393 = vmin.xlane.f32.xlu0 %v1392
    %v1394 = vpop.xlane.xlu0 %1393
    %v1395 = vcvt.f32.s32 %v1394
    %v1396 = vcvt.f32.s32 %v1390
    %v1397 = vshll.u32 %v1396, 16
    %v1398 = vadd.s32 %v1397, %v1395
    %v1399 = vsel %vm485, %v1248, 2147483647
    %v1400 = vand.u32 %v1399, 65535
    %v1401 = vshra.s32 %v1399, 16
    %v1402 = vcvt.s32.f32 %v1400
    %v1403 = vcvt.s32.f32 %v1401
    %1404 = vmin.xlane.f32.xlu0 %v1403
    %v1405 = vpop.xlane.xlu0 %1404
    %vm1406 = vcmp.eq.f32.partialorder %v1403, %v1405
    %v1407 = vsel %vm1406, %v1402, inf
    %1408 = vmin.xlane.f32.xlu0 %v1407
    %v1409 = vpop.xlane.xlu0 %1408
    %v1410 = vcvt.f32.s32 %v1409
    %v1411 = vcvt.f32.s32 %v1405
    %v1412 = vshll.u32 %v1411, 16
    %v1413 = vadd.s32 %v1412, %v1410
    %v1414 = vsel %vm485, %v1249, 2147483647
    %v1415 = vand.u32 %v1414, 65535
    %v1416 = vshra.s32 %v1414, 16
    %v1417 = vcvt.s32.f32 %v1415
    %v1418 = vcvt.s32.f32 %v1416
    %1419 = vmin.xlane.f32.xlu0 %v1418
    %v1420 = vpop.xlane.xlu0 %1419
    %vm1421 = vcmp.eq.f32.partialorder %v1418, %v1420
    %v1422 = vsel %vm1421, %v1417, inf
    %1423 = vmin.xlane.f32.xlu0 %v1422
    %v1424 = vpop.xlane.xlu0 %1423
    %v1425 = vcvt.f32.s32 %v1424
    %v1426 = vcvt.f32.s32 %v1420
    %v1427 = vshll.u32 %v1426, 16
    %v1428 = vadd.s32 %v1427, %v1425
    %v1429 = vsel %vm485, %v1250, 2147483647
    %v1430 = vand.u32 %v1429, 65535
    %v1431 = vshra.s32 %v1429, 16
    %v1432 = vcvt.s32.f32 %v1430
    %v1433 = vcvt.s32.f32 %v1431
    %1434 = vmin.xlane.f32.xlu0 %v1433
    %v1435 = vpop.xlane.xlu0 %1434
    %vm1436 = vcmp.eq.f32.partialorder %v1433, %v1435
    %v1437 = vsel %vm1436, %v1432, inf
    %1438 = vmin.xlane.f32.xlu0 %v1437
    %v1439 = vpop.xlane.xlu0 %1438
    %v1440 = vcvt.f32.s32 %v1439
    %v1441 = vcvt.f32.s32 %v1435
    %v1442 = vshll.u32 %v1441, 16
    %v1443 = vadd.s32 %v1442, %v1440
    %v1444 = vsel %vm485, %v1251, 2147483647
    %v1445 = vand.u32 %v1444, 65535
    %v1446 = vshra.s32 %v1444, 16
    %v1447 = vcvt.s32.f32 %v1445
    %v1448 = vcvt.s32.f32 %v1446
    %1449 = vmin.xlane.f32.xlu0 %v1448
    %v1450 = vpop.xlane.xlu0 %1449
    %vm1451 = vcmp.eq.f32.partialorder %v1448, %v1450
    %v1452 = vsel %vm1451, %v1447, inf
    %1453 = vmin.xlane.f32.xlu0 %v1452
    %v1454 = vpop.xlane.xlu0 %1453
    %v1455 = vcvt.f32.s32 %v1454
    %v1456 = vcvt.f32.s32 %v1450
    %v1457 = vshll.u32 %v1456, 16
    %v1458 = vadd.s32 %v1457, %v1455
    %v1459 = vsel %vm485, %v1252, 2147483647
    %v1460 = vand.u32 %v1459, 65535
    %v1461 = vshra.s32 %v1459, 16
    %v1462 = vcvt.s32.f32 %v1460
    %v1463 = vcvt.s32.f32 %v1461
    %1464 = vmin.xlane.f32.xlu0 %v1463
    %v1465 = vpop.xlane.xlu0 %1464
    %vm1466 = vcmp.eq.f32.partialorder %v1463, %v1465
    %v1467 = vsel %vm1466, %v1462, inf
    %1468 = vmin.xlane.f32.xlu0 %v1467
    %v1469 = vpop.xlane.xlu0 %1468
    %v1470 = vcvt.f32.s32 %v1469
    %v1471 = vcvt.f32.s32 %v1465
    %v1472 = vshll.u32 %v1471, 16
    %v1473 = vadd.s32 %v1472, %v1470
    %v1474 = vsel %vm485, %v1253, 2147483647
    %v1475 = vand.u32 %v1474, 65535
    %v1476 = vshra.s32 %v1474, 16
    %v1477 = vcvt.s32.f32 %v1475
    %v1478 = vcvt.s32.f32 %v1476
    %1479 = vmin.xlane.f32.xlu0 %v1478
    %v1480 = vpop.xlane.xlu0 %1479
    %vm1481 = vcmp.eq.f32.partialorder %v1478, %v1480
    %v1482 = vsel %vm1481, %v1477, inf
    %1483 = vmin.xlane.f32.xlu0 %v1482
    %v1484 = vpop.xlane.xlu0 %1483
    %v1485 = vcvt.f32.s32 %v1484
    %v1486 = vcvt.f32.s32 %v1480
    %v1487 = vshll.u32 %v1486, 16
    %v1488 = vadd.s32 %v1487, %v1485
    %v1489 = vsel %vm485, %v1254, 2147483647
    %v1490 = vand.u32 %v1489, 65535
    %v1491 = vshra.s32 %v1489, 16
    %v1492 = vcvt.s32.f32 %v1490
    %v1493 = vcvt.s32.f32 %v1491
    %1494 = vmin.xlane.f32.xlu0 %v1493
    %v1495 = vpop.xlane.xlu0 %1494
    %vm1496 = vcmp.eq.f32.partialorder %v1493, %v1495
    %v1497 = vsel %vm1496, %v1492, inf
    %1498 = vmin.xlane.f32.xlu0 %v1497
    %v1499 = vpop.xlane.xlu0 %1498
    %v1500 = vcvt.f32.s32 %v1499
    %v1501 = vcvt.f32.s32 %v1495
    %v1502 = vshll.u32 %v1501, 16
    %v1503 = vadd.s32 %v1502, %v1500
    %v1504 = vsel %vm485, %v1255, 2147483647
    %v1505 = vand.u32 %v1504, 65535
    %v1506 = vshra.s32 %v1504, 16
    %v1507 = vcvt.s32.f32 %v1505
    %v1508 = vcvt.s32.f32 %v1506
    %1509 = vmin.xlane.f32.xlu0 %v1508
    %v1510 = vpop.xlane.xlu0 %1509
    %vm1511 = vcmp.eq.f32.partialorder %v1508, %v1510
    %v1512 = vsel %vm1511, %v1507, inf
    %1513 = vmin.xlane.f32.xlu0 %v1512
    %v1514 = vpop.xlane.xlu0 %1513
    %v1515 = vcvt.f32.s32 %v1514
    %v1516 = vcvt.f32.s32 %v1510
    %v1517 = vshll.u32 %v1516, 16
    %v1518 = vadd.s32 %v1517, %v1515
    %v1519 = vsel %vm485, %v1256, 2147483647
    %v1520 = vand.u32 %v1519, 65535
    %v1521 = vshra.s32 %v1519, 16
    %v1522 = vcvt.s32.f32 %v1520
    %v1523 = vcvt.s32.f32 %v1521
    %1524 = vmin.xlane.f32.xlu0 %v1523
    %v1525 = vpop.xlane.xlu0 %1524
    %vm1526 = vcmp.eq.f32.partialorder %v1523, %v1525
    %v1527 = vsel %vm1526, %v1522, inf
    %1528 = vmin.xlane.f32.xlu0 %v1527
    %v1529 = vpop.xlane.xlu0 %1528
    %v1530 = vcvt.f32.s32 %v1529
    %v1531 = vcvt.f32.s32 %v1525
    %v1532 = vshll.u32 %v1531, 16
    %v1533 = vadd.s32 %v1532, %v1530
    %v1534 = vsel %vm485, %v1257, 2147483647
    %v1535 = vand.u32 %v1534, 65535
    %v1536 = vshra.s32 %v1534, 16
    %v1537 = vcvt.s32.f32 %v1535
    %v1538 = vcvt.s32.f32 %v1536
    %1539 = vmin.xlane.f32.xlu0 %v1538
    %v1540 = vpop.xlane.xlu0 %1539
    %vm1541 = vcmp.eq.f32.partialorder %v1538, %v1540
    %v1542 = vsel %vm1541, %v1537, inf
    %1543 = vmin.xlane.f32.xlu0 %v1542
    %v1544 = vpop.xlane.xlu0 %1543
    %v1545 = vcvt.f32.s32 %v1544
    %v1546 = vcvt.f32.s32 %v1540
    %v1547 = vshll.u32 %v1546, 16
    %v1548 = vadd.s32 %v1547, %v1545
    %v1549 = vsel %vm485, %v1258, 2147483647
    %v1550 = vand.u32 %v1549, 65535
    %v1551 = vshra.s32 %v1549, 16
    %v1552 = vcvt.s32.f32 %v1550
    %v1553 = vcvt.s32.f32 %v1551
    %1554 = vmin.xlane.f32.xlu0 %v1553
    %v1555 = vpop.xlane.xlu0 %1554
    %vm1556 = vcmp.eq.f32.partialorder %v1553, %v1555
    %v1557 = vsel %vm1556, %v1552, inf
    %1558 = vmin.xlane.f32.xlu0 %v1557
    %v1559 = vpop.xlane.xlu0 %1558
    %v1560 = vcvt.f32.s32 %v1559
    %v1561 = vcvt.f32.s32 %v1555
    %v1562 = vshll.u32 %v1561, 16
    %v1563 = vadd.s32 %v1562, %v1560
    %v1564 = vsel %vm485, %v1259, 2147483647
    %v1565 = vand.u32 %v1564, 65535
    %v1566 = vshra.s32 %v1564, 16
    %v1567 = vcvt.s32.f32 %v1565
    %v1568 = vcvt.s32.f32 %v1566
    %1569 = vmin.xlane.f32.xlu0 %v1568
    %v1570 = vpop.xlane.xlu0 %1569
    %vm1571 = vcmp.eq.f32.partialorder %v1568, %v1570
    %v1572 = vsel %vm1571, %v1567, inf
    %1573 = vmin.xlane.f32.xlu0 %v1572
    %v1574 = vpop.xlane.xlu0 %1573
    %v1575 = vcvt.f32.s32 %v1574
    %v1576 = vcvt.f32.s32 %v1570
    %v1577 = vshll.u32 %v1576, 16
    %v1578 = vadd.s32 %v1577, %v1575
    %v1579 = vsel %vm485, %v1260, 2147483647
    %v1580 = vand.u32 %v1579, 65535
    %v1581 = vshra.s32 %v1579, 16
    %v1582 = vcvt.s32.f32 %v1580
    %v1583 = vcvt.s32.f32 %v1581
    %1584 = vmin.xlane.f32.xlu0 %v1583
    %v1585 = vpop.xlane.xlu0 %1584
    %vm1586 = vcmp.eq.f32.partialorder %v1583, %v1585
    %v1587 = vsel %vm1586, %v1582, inf
    %1588 = vmin.xlane.f32.xlu0 %v1587
    %v1589 = vpop.xlane.xlu0 %1588
    %v1590 = vcvt.f32.s32 %v1589
    %v1591 = vcvt.f32.s32 %v1585
    %v1592 = vshll.u32 %v1591, 16
    %v1593 = vadd.s32 %v1592, %v1590
    %v1594 = vsel %vm485, %v1261, 2147483647
    %v1595 = vand.u32 %v1594, 65535
    %v1596 = vshra.s32 %v1594, 16
    %v1597 = vcvt.s32.f32 %v1595
    %v1598 = vcvt.s32.f32 %v1596
    %1599 = vmin.xlane.f32.xlu0 %v1598
    %v1600 = vpop.xlane.xlu0 %1599
    %vm1601 = vcmp.eq.f32.partialorder %v1598, %v1600
    %v1602 = vsel %vm1601, %v1597, inf
    %1603 = vmin.xlane.f32.xlu0 %v1602
    %v1604 = vpop.xlane.xlu0 %1603
    %v1605 = vcvt.f32.s32 %v1604
    %v1606 = vcvt.f32.s32 %v1600
    %v1607 = vshll.u32 %v1606, 16
    %v1608 = vadd.s32 %v1607, %v1605
    %v1609 = vsel %vm485, %v1262, 2147483647
    %v1610 = vand.u32 %v1609, 65535
    %v1611 = vshra.s32 %v1609, 16
    %v1612 = vcvt.s32.f32 %v1610
    %v1613 = vcvt.s32.f32 %v1611
    %1614 = vmin.xlane.f32.xlu0 %v1613
    %v1615 = vpop.xlane.xlu0 %1614
    %vm1616 = vcmp.eq.f32.partialorder %v1613, %v1615
    %v1617 = vsel %vm1616, %v1612, inf
    %1618 = vmin.xlane.f32.xlu0 %v1617
    %v1619 = vpop.xlane.xlu0 %1618
    %v1620 = vcvt.f32.s32 %v1619
    %v1621 = vcvt.f32.s32 %v1615
    %v1622 = vshll.u32 %v1621, 16
    %v1623 = vadd.s32 %v1622, %v1620
    %v1624 = vsel %vm485, %v1263, 2147483647
    %v1625 = vand.u32 %v1624, 65535
    %v1626 = vshra.s32 %v1624, 16
    %v1627 = vcvt.s32.f32 %v1625
    %v1628 = vcvt.s32.f32 %v1626
    %1629 = vmin.xlane.f32.xlu0 %v1628
    %v1630 = vpop.xlane.xlu0 %1629
    %vm1631 = vcmp.eq.f32.partialorder %v1628, %v1630
    %v1632 = vsel %vm1631, %v1627, inf
    %1633 = vmin.xlane.f32.xlu0 %v1632
    %v1634 = vpop.xlane.xlu0 %1633
    %v1635 = vcvt.f32.s32 %v1634
    %v1636 = vcvt.f32.s32 %v1630
    %v1637 = vshll.u32 %v1636, 16
    %v1638 = vadd.s32 %v1637, %v1635
    %vm1639 = vcmp.eq.s32.totalorder %v1278, %v151
    %vm1640 = vcmp.eq.s32.totalorder %v1293, %v152
    %vm1641 = vcmp.eq.s32.totalorder %v1308, %v153
    %vm1642 = vcmp.eq.s32.totalorder %v1323, %v154
    %vm1643 = vcmp.eq.s32.totalorder %v1338, %v155
    %vm1644 = vcmp.eq.s32.totalorder %v1353, %v156
    %vm1645 = vcmp.eq.s32.totalorder %v1368, %v157
    %vm1646 = vcmp.eq.s32.totalorder %v1383, %v158
    %vm1647 = vcmp.eq.s32.totalorder %v1398, %v159
    %vm1648 = vcmp.eq.s32.totalorder %v1413, %v160
    %vm1649 = vcmp.eq.s32.totalorder %v1428, %v161
    %vm1650 = vcmp.eq.s32.totalorder %v1443, %v162
    %vm1651 = vcmp.eq.s32.totalorder %v1458, %v163
    %vm1652 = vcmp.eq.s32.totalorder %v1473, %v164
    %vm1653 = vcmp.eq.s32.totalorder %v1488, %v165
    %vm1654 = vcmp.eq.s32.totalorder %v1503, %v166
    %vm1655 = vcmp.eq.s32.totalorder %v1518, %v167
    %vm1656 = vcmp.eq.s32.totalorder %v1533, %v168
    %vm1657 = vcmp.eq.s32.totalorder %v1548, %v169
    %vm1658 = vcmp.eq.s32.totalorder %v1563, %v170
    %vm1659 = vcmp.eq.s32.totalorder %v1578, %v171
    %vm1660 = vcmp.eq.s32.totalorder %v1593, %v172
    %vm1661 = vcmp.eq.s32.totalorder %v1608, %v173
    %vm1662 = vcmp.eq.s32.totalorder %v1623, %v174
    %vm1663 = vcmp.eq.s32.totalorder %v1638, %v175
    %vm1664 = vmand %vm1639, %vm233
    %vm1665 = vmand %vm1640, %vm234
    %vm1666 = vmand %vm1641, %vm235
    %vm1667 = vmand %vm1642, %vm236
    %vm1668 = vmand %vm1643, %vm237
    %vm1669 = vmand %vm1644, %vm238
    %vm1670 = vmand %vm1645, %vm239
    %vm1671 = vmand %vm1646, %vm240
    %vm1672 = vmand %vm1647, %vm241
    %vm1673 = vmand %vm1648, %vm242
    %vm1674 = vmand %vm1649, %vm243
    %vm1675 = vmand %vm1650, %vm244
    %vm1676 = vmand %vm1651, %vm245
    %vm1677 = vmand %vm1652, %vm246
    %vm1678 = vmand %vm1653, %vm247
    %vm1679 = vmand %vm1654, %vm248
    %vm1680 = vmand %vm1655, %vm249
    %vm1681 = vmand %vm1656, %vm250
    %vm1682 = vmand %vm1657, %vm251
    %vm1683 = vmand %vm1658, %vm252
    %vm1684 = vmand %vm1659, %vm253
    %vm1685 = vmand %vm1660, %vm254
    %vm1686 = vmand %vm1661, %vm255
    %vm1687 = vmand %vm1662, %vm256
    %vm1688 = vmand %vm1663, %vm257
    %v1689 = vsel %vm1664, 1, 0
    %v1690 = vsel %vm1665, 1, 0
    %v1691 = vsel %vm1666, 1, 0
    %v1692 = vsel %vm1667, 1, 0
    %v1693 = vsel %vm1668, 1, 0
    %v1694 = vsel %vm1669, 1, 0
    %v1695 = vsel %vm1670, 1, 0
    %v1696 = vsel %vm1671, 1, 0
    %v1697 = vsel %vm1672, 1, 0
    %v1698 = vsel %vm1673, 1, 0
    %v1699 = vsel %vm1674, 1, 0
    %v1700 = vsel %vm1675, 1, 0
    %v1701 = vsel %vm1676, 1, 0
    %v1702 = vsel %vm1677, 1, 0
    %v1703 = vsel %vm1678, 1, 0
    %v1704 = vsel %vm1679, 1, 0
    %v1705 = vsel %vm1680, 1, 0
    %v1706 = vsel %vm1681, 1, 0
    %v1707 = vsel %vm1682, 1, 0
    %v1708 = vsel %vm1683, 1, 0
    %v1709 = vsel %vm1684, 1, 0
    %v1710 = vsel %vm1685, 1, 0
    %v1711 = vsel %vm1686, 1, 0
    %v1712 = vsel %vm1687, 1, 0
    %v1713 = vsel %vm1688, 1, 0
    %v1714 = vcvt.s32.f32 %v1689
    %v1715 = vcvt.s32.f32 %v1690
    %v1716 = vcvt.s32.f32 %v1691
    %v1717 = vcvt.s32.f32 %v1692
    %v1718 = vcvt.s32.f32 %v1693
    %v1719 = vcvt.s32.f32 %v1694
    %v1720 = vcvt.s32.f32 %v1695
    %v1721 = vcvt.s32.f32 %v1696
    %v1722 = vcvt.s32.f32 %v1697
    %v1723 = vcvt.s32.f32 %v1698
    %v1724 = vcvt.s32.f32 %v1699
    %v1725 = vcvt.s32.f32 %v1700
    %v1726 = vcvt.s32.f32 %v1701
    %v1727 = vcvt.s32.f32 %v1702
    %v1728 = vcvt.s32.f32 %v1703
    %v1729 = vcvt.s32.f32 %v1704
    %v1730 = vcvt.s32.f32 %v1705
    %v1731 = vcvt.s32.f32 %v1706
    %v1732 = vcvt.s32.f32 %v1707
    %v1733 = vcvt.s32.f32 %v1708
    %v1734 = vcvt.s32.f32 %v1709
    %v1735 = vcvt.s32.f32 %v1710
    %v1736 = vcvt.s32.f32 %v1711
    %v1737 = vcvt.s32.f32 %v1712
    %v1738 = vcvt.s32.f32 %v1713
    %1740 = vset.pattern.permute.xlu0 0
    %1741 = vperm.xlu0 %1740, %v1714
    %v1742 = vpop.permute.xlu0 %1741
    %1745 = vset.pattern.permute.xlu0 0
    %1746 = vperm.xlu0 %1745, %v1715
    %v1747 = vpop.permute.xlu0 %1746
    %1750 = vset.pattern.permute.xlu0 0
    %1751 = vperm.xlu0 %1750, %v1716
    %v1752 = vpop.permute.xlu0 %1751
    %1755 = vset.pattern.permute.xlu0 0
    %1756 = vperm.xlu0 %1755, %v1717
    %v1757 = vpop.permute.xlu0 %1756
    %1760 = vset.pattern.permute.xlu0 0
    %1761 = vperm.xlu0 %1760, %v1718
    %v1762 = vpop.permute.xlu0 %1761
    %1765 = vset.pattern.permute.xlu0 0
    %1766 = vperm.xlu0 %1765, %v1719
    %v1767 = vpop.permute.xlu0 %1766
    %1770 = vset.pattern.permute.xlu0 0
    %1771 = vperm.xlu0 %1770, %v1720
    %v1772 = vpop.permute.xlu0 %1771
    %1775 = vset.pattern.permute.xlu0 0
    %1776 = vperm.xlu0 %1775, %v1721
    %v1777 = vpop.permute.xlu0 %1776
    %1780 = vset.pattern.permute.xlu0 0
    %1781 = vperm.xlu0 %1780, %v1722
    %v1782 = vpop.permute.xlu0 %1781
    %1785 = vset.pattern.permute.xlu0 0
    %1786 = vperm.xlu0 %1785, %v1723
    %v1787 = vpop.permute.xlu0 %1786
    %1790 = vset.pattern.permute.xlu0 0
    %1791 = vperm.xlu0 %1790, %v1724
    %v1792 = vpop.permute.xlu0 %1791
    %1795 = vset.pattern.permute.xlu0 0
    %1796 = vperm.xlu0 %1795, %v1725
    %v1797 = vpop.permute.xlu0 %1796
    %1800 = vset.pattern.permute.xlu0 0
    %1801 = vperm.xlu0 %1800, %v1726
    %v1802 = vpop.permute.xlu0 %1801
    %1805 = vset.pattern.permute.xlu0 0
    %1806 = vperm.xlu0 %1805, %v1727
    %v1807 = vpop.permute.xlu0 %1806
    %1810 = vset.pattern.permute.xlu0 0
    %1811 = vperm.xlu0 %1810, %v1728
    %v1812 = vpop.permute.xlu0 %1811
    %1815 = vset.pattern.permute.xlu0 0
    %1816 = vperm.xlu0 %1815, %v1729
    %v1817 = vpop.permute.xlu0 %1816
    %1820 = vset.pattern.permute.xlu0 0
    %1821 = vperm.xlu0 %1820, %v1730
    %v1822 = vpop.permute.xlu0 %1821
    %1825 = vset.pattern.permute.xlu0 0
    %1826 = vperm.xlu0 %1825, %v1731
    %v1827 = vpop.permute.xlu0 %1826
    %1830 = vset.pattern.permute.xlu0 0
    %1831 = vperm.xlu0 %1830, %v1732
    %v1832 = vpop.permute.xlu0 %1831
    %1835 = vset.pattern.permute.xlu0 0
    %1836 = vperm.xlu0 %1835, %v1733
    %v1837 = vpop.permute.xlu0 %1836
    %1840 = vset.pattern.permute.xlu0 0
    %1841 = vperm.xlu0 %1840, %v1734
    %v1842 = vpop.permute.xlu0 %1841
    %1845 = vset.pattern.permute.xlu0 0
    %1846 = vperm.xlu0 %1845, %v1735
    %v1847 = vpop.permute.xlu0 %1846
    %1850 = vset.pattern.permute.xlu0 0
    %1851 = vperm.xlu0 %1850, %v1736
    %v1852 = vpop.permute.xlu0 %1851
    %1855 = vset.pattern.permute.xlu0 0
    %1856 = vperm.xlu0 %1855, %v1737
    %v1857 = vpop.permute.xlu0 %1856
    %1860 = vset.pattern.permute.xlu0 0
    %1861 = vperm.xlu0 %1860, %v1738
    %v1862 = vpop.permute.xlu0 %1861
    %v1864 = vmul.f32 %v786, %v1742
    %v1865 = vmul.f32 %v787, %v1747
    %v1866 = vmul.f32 %v788, %v1752
    %v1867 = vmul.f32 %v789, %v1757
    %v1868 = vmul.f32 %v790, %v1762
    %v1869 = vmul.f32 %v791, %v1767
    %v1870 = vmul.f32 %v792, %v1772
    %v1871 = vmul.f32 %v793, %v1777
    %v1872 = vmul.f32 %v794, %v1782
    %v1873 = vmul.f32 %v795, %v1787
    %v1874 = vmul.f32 %v796, %v1792
    %v1875 = vmul.f32 %v797, %v1797
    %v1876 = vmul.f32 %v798, %v1802
    %v1877 = vmul.f32 %v799, %v1807
    %v1878 = vmul.f32 %v800, %v1812
    %v1879 = vmul.f32 %v801, %v1817
    %v1880 = vmul.f32 %v802, %v1822
    %v1881 = vmul.f32 %v803, %v1827
    %v1882 = vmul.f32 %v804, %v1832
    %v1883 = vmul.f32 %v805, %v1837
    %v1884 = vmul.f32 %v806, %v1842
    %v1885 = vmul.f32 %v807, %v1847
    %v1886 = vmul.f32 %v808, %v1852
    %v1887 = vmul.f32 %v809, %v1857
    %v1888 = vmul.f32 %v810, %v1862
    %v1889 = vlaneseq
    %v1890 = vshrl.u32 %v1889, 7
    %v1891 = vsub.s32 0, %v1890
    %v1892 = vrot.slane %v176, %v1891
    %v1893 = vlaneseq
    %v1894 = vshrl.u32 %v1893, 7
    %v1895 = vsub.s32 1, %v1894
    %v1896 = vrot.slane %v176, %v1895
    %vm1897 = vcmp.eq.s32.totalorder %v182, %v1892
    %vm1898 = vcmp.eq.s32.totalorder %v182, %v1896
    %vm1899 = vcmp.eq.s32.totalorder %v183, %v1892
    %vm1900 = vcmp.eq.s32.totalorder %v183, %v1896
    %v1901 = vsel %vm1897, 1, 0
    %v1902 = vsel %vm1898, 1, 0
    %v1903 = vsel %vm1899, 1, 0
    %v1904 = vsel %vm1900, 1, 0
    %v1905 = vcvt.s32.f32 %v1901
    %v1906 = vcvt.s32.f32 %v1902
    %v1907 = vcvt.s32.f32 %v1903
    %v1908 = vcvt.s32.f32 %v1904
    %v1909 = vld [vmem:[#allocation2] sm:$0xff]
    %v1910 = vld [vmem:[#allocation2 + $0x8] sm:$0x3]
    %vm1911 = vcmask 588800
    %v1913 = vsel %vm1911, %v1906, 0
    %v1916 = vsel %vm1911, %v1908, 0
    %1918 = vmatprep.subr.mxu0 0.0
    %1919 = vmatpush1.msra.mxu0 %v1864
    %1920 = vmatprep.subr.mxu0 0.0
    %1921 = vmatpush1.msra.mxu0 %v1865
    %1922 = vmatprep.subr.mxu0 0.0
    %1923 = vmatpush1.msra.mxu0 %v1866
    %1924 = vmatprep.subr.mxu0 0.0
    %1925 = vmatpush1.msra.mxu0 %v1867
    %1926 = vmatprep.subr.mxu0 0.0
    %1927 = vmatpush1.msra.mxu0 %v1868
    %1928 = vmatprep.subr.mxu0 0.0
    %1929 = vmatpush1.msra.mxu0 %v1869
    %1930 = vmatprep.subr.mxu0 0.0
    %1931 = vmatpush1.msra.mxu0 %v1870
    %1932 = vmatprep.subr.mxu0 0.0
    %1933 = vmatpush1.msra.mxu0 %v1871
    %1934 = vmatprep.subr.mxu0 0.0
    %1935 = vmatpush1.msra.mxu0 %v1872
    %1936 = vmatprep.subr.mxu0 0.0
    %1937 = vmatpush1.msra.mxu0 %v1873
    %1938 = vmatprep.subr.mxu0 0.0
    %1939 = vmatpush1.msra.mxu0 %v1874
    %1940 = vmatprep.subr.mxu0 0.0
    %1941 = vmatpush1.msra.mxu0 %v1875
    %1942 = vmatprep.subr.mxu0 0.0
    %1943 = vmatpush1.msra.mxu0 %v1876
    %1944 = vmatprep.subr.mxu0 0.0
    %1945 = vmatpush1.msra.mxu0 %v1877
    %1946 = vmatprep.subr.mxu0 0.0
    %1947 = vmatpush1.msra.mxu0 %v1878
    %1948 = vmatprep.subr.mxu0 0.0
    %1949 = vmatpush1.msra.mxu0 %v1879
    %1950 = vmatprep.subr.mxu0 0.0
    %1951 = vmatpush1.msra.mxu0 %v1880
    %1952 = vmatprep.subr.mxu0 0.0
    %1953 = vmatpush1.msra.mxu0 %v1881
    %1954 = vmatprep.subr.mxu0 0.0
    %1955 = vmatpush1.msra.mxu0 %v1882
    %1956 = vmatprep.subr.mxu0 0.0
    %1957 = vmatpush1.msra.mxu0 %v1883
    %1958 = vmatprep.subr.mxu0 0.0
    %1959 = vmatpush1.msra.mxu0 %v1884
    %1960 = vmatprep.subr.mxu0 0.0
    %1961 = vmatpush1.msra.mxu0 %v1885
    %1962 = vmatprep.subr.mxu0 0.0
    %1963 = vmatpush1.msra.mxu0 %v1886
    %1964 = vmatprep.subr.mxu0 0.0
    %1965 = vmatpush1.msra.mxu0 %v1887
    %1966 = vmatprep.subr.mxu0 0.0
    %1967 = vmatpush1.msra.mxu0 %v1888
    %1968 = vmatprep.subr.mxu0 0.0
    %1969 = vmatpush1.msra.mxu0 0.0
    %1970 = vmatprep.subr.mxu0 0.0
    %1971 = vmatpush1.msra.mxu0 0.0
    %1972 = vmatprep.subr.mxu0 0.0
    %1973 = vmatpush1.msra.mxu0 0.0
    %1974 = vmatprep.subr.mxu0 0.0
    %1975 = vmatpush1.msra.mxu0 0.0
    %1976 = vmatprep.subr.mxu0 0.0
    %1977 = vmatpush1.msra.mxu0 0.0
    %1978 = vmatprep.subr.mxu0 0.0
    %1979 = vmatpush1.msra.mxu0 0.0
    %1980 = vmatprep.subr.mxu0 0.0
    %1981 = vmatpush1.msra.mxu0 0.0
    %1982 = vmatprep.mubr.f32.mxu0 %v1913
    %1983 = vmatmul.mubr.f32.gmra.mrb[0].mxu0 %v1905
    %v1984 = vpop.f32.mrb[0].mxu0
    %v1985 = vadd.f32 0.0, %v1984
    %v1986 = vpop.f32.mrb[0].mxu0
    %1987 = vmatprep.mubr.f32.mxu0 %v1916
    %1988 = vmatmul.mubr.f32.gmra.mrb[0].mxu0 %v1907
    %v1989 = vpop.f32.mrb[0].mxu0
    %v1990 = vadd.f32 0.0, %v1989
    %v1991 = vpop.f32.mrb[0].mxu0
    %1992 = vdwg.mxu0
    %v1993 = vadd.f32 %v1909, %v1985
    %v1994 = vadd.f32 %v1910, %v1990
    %1995 = vst.msk [vmem:[#allocation2] sm:$0xff] %vm485, %v1993
    %vm1996 = vcmask 74752
    %1997 = vst.msk [vmem:[#allocation2 + $0x8] sm:$0x3] %vm1996, %v1994
    %v1998 = vld [vmem:[#allocation4] sm:$0x1]
    %v1999 = vmul.f32 %v460, %v1742
    %v2000 = vmul.f32 %v461, %v1747
    %v2001 = vmul.f32 %v462, %v1752
    %v2002 = vmul.f32 %v463, %v1757
    %v2003 = vmul.f32 %v464, %v1762
    %v2004 = vmul.f32 %v465, %v1767
    %v2005 = vmul.f32 %v466, %v1772
    %v2006 = vmul.f32 %v467, %v1777
    %v2007 = vmul.f32 %v468, %v1782
    %v2008 = vmul.f32 %v469, %v1787
    %v2009 = vmul.f32 %v470, %v1792
    %v2010 = vmul.f32 %v471, %v1797
    %v2011 = vmul.f32 %v472, %v1802
    %v2012 = vmul.f32 %v473, %v1807
    %v2013 = vmul.f32 %v474, %v1812
    %v2014 = vmul.f32 %v475, %v1817
    %v2015 = vmul.f32 %v476, %v1822
    %v2016 = vmul.f32 %v477, %v1827
    %v2017 = vmul.f32 %v478, %v1832
    %v2018 = vmul.f32 %v479, %v1837
    %v2019 = vmul.f32 %v480, %v1842
    %v2020 = vmul.f32 %v481, %v1847
    %v2021 = vmul.f32 %v482, %v1852
    %v2022 = vmul.f32 %v483, %v1857
    %v2023 = vmul.f32 %v484, %v1862
    %v2024 = vsel %vm485, %v1999, 0.0
    %v2025 = vsel %vm485, %v2000, 0.0
    %v2026 = vadd.f32 %v2024, %v2025
    %v2027 = vsel %vm485, %v2001, 0.0
    %v2028 = vadd.f32 %v2026, %v2027
    %v2029 = vsel %vm485, %v2002, 0.0
    %v2030 = vadd.f32 %v2028, %v2029
    %v2031 = vsel %vm485, %v2003, 0.0
    %v2032 = vadd.f32 %v2030, %v2031
    %v2033 = vsel %vm485, %v2004, 0.0
    %v2034 = vadd.f32 %v2032, %v2033
    %v2035 = vsel %vm485, %v2005, 0.0
    %v2036 = vadd.f32 %v2034, %v2035
    %v2037 = vsel %vm485, %v2006, 0.0
    %v2038 = vadd.f32 %v2036, %v2037
    %v2039 = vsel %vm485, %v2007, 0.0
    %v2040 = vadd.f32 %v2038, %v2039
    %v2041 = vsel %vm485, %v2008, 0.0
    %v2042 = vadd.f32 %v2040, %v2041
    %v2043 = vsel %vm485, %v2009, 0.0
    %v2044 = vadd.f32 %v2042, %v2043
    %v2045 = vsel %vm485, %v2010, 0.0
    %v2046 = vadd.f32 %v2044, %v2045
    %v2047 = vsel %vm485, %v2011, 0.0
    %v2048 = vadd.f32 %v2046, %v2047
    %v2049 = vsel %vm485, %v2012, 0.0
    %v2050 = vadd.f32 %v2048, %v2049
    %v2051 = vsel %vm485, %v2013, 0.0
    %v2052 = vadd.f32 %v2050, %v2051
    %v2053 = vsel %vm485, %v2014, 0.0
    %v2054 = vadd.f32 %v2052, %v2053
    %v2055 = vsel %vm485, %v2015, 0.0
    %v2056 = vadd.f32 %v2054, %v2055
    %v2057 = vsel %vm485, %v2016, 0.0
    %v2058 = vadd.f32 %v2056, %v2057
    %v2059 = vsel %vm485, %v2017, 0.0
    %v2060 = vadd.f32 %v2058, %v2059
    %v2061 = vsel %vm485, %v2018, 0.0
    %v2062 = vadd.f32 %v2060, %v2061
    %v2063 = vsel %vm485, %v2019, 0.0
    %v2064 = vadd.f32 %v2062, %v2063
    %v2065 = vsel %vm485, %v2020, 0.0
    %v2066 = vadd.f32 %v2064, %v2065
    %v2067 = vsel %vm485, %v2021, 0.0
    %v2068 = vadd.f32 %v2066, %v2067
    %v2069 = vsel %vm485, %v2022, 0.0
    %v2070 = vadd.f32 %v2068, %v2069
    %v2071 = vsel %vm485, %v2023, 0.0
    %v2072 = vadd.f32 %v2070, %v2071
    %v2073 = vrot.slane %v2072, 4
    %v2074 = vadd.f32 %v2072, %v2073
    %v2075 = vrot.slane %v2074, 2
    %v2076 = vadd.f32 %v2074, %v2075
    %v2077 = vrot.slane %v2076, 1
    %v2078 = vadd.f32 %v2076, %v2077
    %v2079 = vadd.f32 %v1998, %v2078
    %2080 = vst.msk [vmem:[#allocation4] sm:$0x1] %vm1212, %v2079
    // Predicated region
    $region22: #{online_label_smoothing_forward.1} parent=1 // pred_check
      _
    $region23: #{online_label_smoothing_forward.1} parent=1 // pred_check_branch
      %2082 = sbr.rel (0) target = $region25
    $region24: #{online_label_smoothing_forward.1} parent=1 // pred_region
      _
    $region25: #{online_label_smoothing_forward.1} parent=1 // pred_fallthru
      _
    // Predicated region
    $region26: #{online_label_smoothing_forward.1} parent=1 // pred_check
      _
    $region27: #{online_label_smoothing_forward.1} parent=1 // pred_check_branch
      %2084 = sbr.rel (0) target = $region29
    $region28: #{online_label_smoothing_forward.1} parent=1 // pred_region
      %s2086 = ssub.s32 256, 256
      %2087 = vsyncadd [#allocation3], %s2086
      %s2088 = sshll.u32 [#allocation2], 4
      %s2089 = int_to_ptr.vmem [resolvable:$true] %s2088
      %2094 = dma.vmem_to_hbm [thread:$0]  %s2089, 256, %s5, [#allocation3], 128, 128, 8
    $region29: #{online_label_smoothing_forward.1} parent=1 // pred_fallthru
      _
    // Predicated region
    $region30: #{online_label_smoothing_forward.1} parent=1 // pred_check
      _
    $region31: #{online_label_smoothing_forward.1} parent=1 // pred_check_branch
      %2096 = sbr.rel (0) target = $region33
    $region32: #{online_label_smoothing_forward.1} parent=1 // pred_region
      %s2098 = ssub.s32 16, 16
      %2099 = vsyncadd [#allocation5], %s2098
      %s2101 = sshll.u32 [#allocation4], 4
      %s2102 = int_to_ptr.vmem [resolvable:$true] %s2101
      %2104 = dma.vmem_to_hbm [thread:$0]  %s2102, 16, %s6, [#allocation5]
    $region33: #{online_label_smoothing_forward.1} parent=1 // pred_fallthru
      _
    // Predicated region
    $region34: #{online_label_smoothing_forward.1} parent=1 // pred_check
      _
    $region35: #{online_label_smoothing_forward.1} parent=1 // pred_check_branch
      %2106 = sbr.rel (0) target = $region37
    $region36: #{online_label_smoothing_forward.1} parent=1 // pred_region
      _
    $region37: #{online_label_smoothing_forward.1} parent=1 // pred_fallthru
      _
    // Predicated region
    $region38: #{online_label_smoothing_forward.1} parent=1 // pred_check
      _
    $region39: #{online_label_smoothing_forward.1} parent=1 // pred_check_branch
      %2108 = sbr.rel (0) target = $region41
    $region40: #{online_label_smoothing_forward.1} parent=1 // pred_region
      %2109 = dma.done [#allocation3], 256
    $region41: #{online_label_smoothing_forward.1} parent=1 // pred_fallthru
      _
    // Predicated region
    $region42: #{online_label_smoothing_forward.1} parent=1 // pred_check
      _
    $region43: #{online_label_smoothing_forward.1} parent=1 // pred_check_branch
      %2111 = sbr.rel (0) target = $region45
    $region44: #{online_label_smoothing_forward.1} parent=1 // pred_region
      %2112 = dma.done [#allocation5], 16
    $region45: #{online_label_smoothing_forward.1} parent=1 // pred_fallthru
      _
    %2113 = vsyncpa [#allocation3], 1
    %2114 = vsyncpa [#allocation5], 1

</llo_original>
